<compile_context>
chip_gen: v6e
topology: v6e:2x2x1
jax: 0.10.0
libtpu: 0.0.40
codegen_flags: <defaults>
</compile_context>

<pallas_src>
import functools

import jax
import jax.numpy as jnp
from jax.experimental import pallas as pl
from jax.experimental.pallas import tpu as pltpu


def _mingru_scan_kernel(*refs, tile_t, hidden_p, batch, num_dirs, hoist_w):
    """Sequential (h-dependent) part of minGRU.

    refs layout (built by `_run_scan`):
      refs[0:num_dirs]               xproj views, each (B, tile_t, 2*Hp) bf16
                                     (dir 0 walks forward, dir 1 gets
                                      reverse-addressed blocks)
      refs[num_dirs]                 whzh: (Hp, 2*Hp) recurrent weights (bf16)
      refs[num_dirs+1 : 2nd+1]       outputs, each (B, tile_t, Hp) f32
      refs[2nd+1]                    h scratch: (num_dirs*B, Hp) f32 carry
    """
    x_refs = refs[:num_dirs]
    whzh_ref = refs[num_dirs]
    out_refs = refs[num_dirs + 1: 2 * num_dirs + 1]
    h_ref = refs[2 * num_dirs + 1]

    @pl.when(pl.program_id(0) == 0)
    def _():
        h_ref[...] = jnp.zeros_like(h_ref)

    # For small weights keep them in vregs; for large H let the per-step matmul
    # read straight from the VMEM ref (vld slots have slack, vregs do not).
    whzh_hoisted = whzh_ref[...] if hoist_w else None

    # Static Python loop: all in-block indices are compile-time constants, so
    # Mosaic emits plain static sublane slices.
    for i in range(tile_t):
        w = whzh_hoisted if hoist_w else whzh_ref[...]
        h_all = h_ref[...]                                     # (nd*B, Hp) f32
        # One stacked matmul for all directions (bf16 operands, f32 accum).
        pre = jnp.dot(h_all.astype(w.dtype), w,
                      preferred_element_type=jnp.float32)      # (nd*B, 2Hp)
        for d in range(num_dirs):
            # Forward direction walks the block left->right; backward walks it
            # right->left (its block was fetched with a reversed index_map).
            li = i if d == 0 else tile_t - 1 - i
            lo = d * batch
            pre_d = (pre[lo:lo + batch, :]
                     + x_refs[d][:, li, :].astype(jnp.float32))  # (B, 2Hp)
            z = jax.nn.sigmoid(pre_d[:, :hidden_p])
            h_tilde = jnp.tanh(pre_d[:, hidden_p:])
            h_d = h_all[lo:lo + batch, :]
            h_new = h_d + z * (h_tilde - h_d)                  # == (1-z)h+z*h~
            h_ref[pl.ds(lo, batch), :] = h_new
            out_refs[d][:, li, :] = h_new.astype(out_refs[d].dtype)


def _pick_tile_t(seq_len, batch, hidden_p, num_dirs, x_itemsize, out_itemsize):
    """Largest tile_t (multiple of 8, <=256) whose double-buffered streamed
    blocks fit a conservative VMEM budget that also works on v7x (64 MiB)."""
    per_t = num_dirs * 2 * batch * (2 * hidden_p * x_itemsize
                                    + hidden_p * out_itemsize)
    budget = 24 * 1024 * 1024
    tile_t = max(8, min(256, (budget // max(per_t, 1)) // 8 * 8))
    t_pad8 = ((seq_len + 7) // 8) * 8
    return int(min(tile_t, t_pad8))


def _vmem_limit_bytes():
    """Explicit scoped-VMEM limit: ~3/4 of physical, capped, per generation."""
    try:
        cap = int(pltpu.get_tpu_info().vmem_capacity_bytes)
    except Exception:  # pragma: no cover - conservative fallback
        cap = 64 * 1024 * 1024
    return max(32 * 1024 * 1024, min(cap * 3 // 4, 96 * 1024 * 1024))


def _run_scan(xproj, whzh, *, hidden_p, tile_t, num_dirs):
    """xproj: (B, Tp, 2*Hp) bf16, whzh: (Hp, 2*Hp).

    Returns num_dirs arrays of shape (B, Tp, Hp) f32."""
    B, Tp, _ = xproj.shape
    Hp = hidden_p
    nb = Tp // tile_t

    x_specs = [pl.BlockSpec((B, tile_t, 2 * Hp), lambda tb: (0, tb, 0))]
    out_specs = [pl.BlockSpec((B, tile_t, Hp), lambda tb: (0, tb, 0))]
    if num_dirs == 2:
        # Backward direction: walk time blocks in reverse purely via the
        # index_map (in-block reversal uses static indices inside the kernel),
        # so no x[::-1] / out[::-1] HBM copies are ever materialized.
        x_specs.append(
            pl.BlockSpec((B, tile_t, 2 * Hp), lambda tb: (0, nb - 1 - tb, 0)))
        out_specs.append(
            pl.BlockSpec((B, tile_t, Hp), lambda tb: (0, nb - 1 - tb, 0)))

    w_spec = pl.BlockSpec((Hp, 2 * Hp), lambda tb: (0, 0))   # resident weights

    hoist_w = Hp * 2 * Hp * whzh.dtype.itemsize <= 64 * 1024

    kernel = functools.partial(_mingru_scan_kernel, tile_t=tile_t,
                               hidden_p=Hp, batch=B, num_dirs=num_dirs,
                               hoist_w=hoist_w)

    outs = pl.pallas_call(
        kernel,
        out_shape=tuple(jax.ShapeDtypeStruct((B, Tp, Hp), jnp.float32)
                        for _ in range(num_dirs)),
        grid_spec=pltpu.PrefetchScalarGridSpec(
            num_scalar_prefetch=0,
            grid=(nb,),
            in_specs=x_specs + [w_spec],
            out_specs=out_specs,
            scratch_shapes=[pltpu.VMEM((num_dirs * B, Hp), jnp.float32)],
        ),
        compiler_params=pltpu.CompilerParams(
            dimension_semantics=("arbitrary",),     # sequential recurrence
            vmem_limit_bytes=_vmem_limit_bytes(),
        ),
    )(*([xproj] * num_dirs + [whzh]))
    return outs


def min_gru_forward(x, params, *, bidirectional=False,
                    matmul_dtype=jnp.bfloat16, xproj_dtype=jnp.bfloat16):
    """Pallas MinGRU forward.

    x: (B, T, I) -> (outputs, h_last), matching the PyTorch module:
        outputs: (B, T, H * num_dirs),  h_last: (B, H * num_dirs)
    Both directions share the same cell weights (as in the module).
    """
    B, T, I = x.shape
    w_z, b_z = params["w_z"], params["b_z"]
    w_h, b_h = params["w_h"], params["b_h"]
    H = w_z.shape[0]
    num_dirs = 2 if bidirectional else 1

    # Lane-align the hidden dim: pad H -> Hp (multiple of 128) with zero
    # weights/biases.  Padded h columns provably stay exactly 0 through the
    # recurrence, so slicing [:H] at the end recovers the exact result.
    Hp = ((H + 127) // 128) * 128

    def pad_last(m, n):
        return jnp.pad(m, [(0, 0)] * (m.ndim - 1) + [(0, n - m.shape[-1])])

    # Split the cat([x, h]) Linear into its x-part and h-part (mathematically
    # identical) and fuse the z / h projections into (I,2Hp)/(Hp,2Hp) mats.
    wxz = pad_last(w_z[:, :I].T, Hp)                                  # (I, Hp)
    wxh = pad_last(w_h[:, :I].T, Hp)                                  # (I, Hp)
    whz = pad_last(jnp.pad(w_z[:, I:].T, ((0, Hp - H), (0, 0))), Hp)  # (Hp,Hp)
    whh = pad_last(jnp.pad(w_h[:, I:].T, ((0, Hp - H), (0, 0))), Hp)  # (Hp,Hp)
    wx = jnp.concatenate([wxz, wxh], axis=1)                          # (I,2Hp)
    wh = jnp.concatenate([whz, whh], axis=1)                          # (Hp,2Hp)
    b = jnp.concatenate([pad_last(b_z, Hp),
                         pad_last(b_h, Hp)]).astype(jnp.float32)      # (2Hp,)

    # Hoisted, time-independent x projection: one big batched matmul (bf16
    # operands, f32 accumulation), biases folded in once, stored as bf16 so
    # the kernel streams half the bytes.
    xproj = jnp.einsum(
        "bti,ih->bth", x.astype(matmul_dtype), wx.astype(matmul_dtype),
        preferred_element_type=jnp.float32) + b
    xproj = xproj.astype(xproj_dtype)                                 # (B,T,2Hp)

    tile_t = _pick_tile_t(T, B, Hp, num_dirs,
                          jnp.dtype(xproj_dtype).itemsize, 4)
    Tp = ((T + tile_t - 1) // tile_t) * tile_t
    if Tp != T:
        # Zero padding (after the bias add) keeps both directions' recurrent
        # state exactly 0 through the padded steps.
        xproj = jnp.pad(xproj, ((0, 0), (0, Tp - T), (0, 0)))

    outs = _run_scan(xproj, wh.astype(matmul_dtype), hidden_p=Hp,
                     tile_t=tile_t, num_dirs=num_dirs)

    out_f = outs[0][:, :T, :H]
    if not bidirectional:
        return out_f, out_f[:, -1, :]
    out_b = outs[1][:, :T, :H]
    # TODO(synk): downstream consumers that can take the two direction outputs
    # separately avoid this extra XLA concat pass over the whole output.
    outputs = jnp.concatenate([out_f, out_b], axis=2)
    h_last = jnp.concatenate([out_f[:, -1, :], out_b[:, 0, :]], axis=1)
    return outputs, h_last


def _reference(x, params, bidirectional=False):
    """Pure-JAX (f32, highest precision) replica of the PyTorch loop."""
    B, T, I = x.shape
    w_z, b_z = params["w_z"], params["b_z"]
    w_h, b_h = params["w_h"], params["b_h"]
    H = w_z.shape[0]
    hi = jax.lax.Precision.HIGHEST

    def cell(x_t, h):
        comb = jnp.concatenate([x_t, h], axis=1)
        z = jax.nn.sigmoid(jnp.dot(comb, w_z.T, precision=hi) + b_z)
        h_t = jnp.tanh(jnp.dot(comb, w_h.T, precision=hi) + b_h)
        return (1.0 - z) * h + z * h_t

    def scan_dir(xs):
        def step(h, x_t):
            h_new = cell(x_t, h)
            return h_new, h_new
        _, ys = jax.lax.scan(step, jnp.zeros((B, H), jnp.float32), xs)
        return ys                                              # (T, B, H)

    x_tm = jnp.transpose(x, (1, 0, 2))
    out_f = jnp.transpose(scan_dir(x_tm), (1, 0, 2))
    if not bidirectional:
        return out_f, out_f[:, -1, :]
    out_b = jnp.transpose(scan_dir(x_tm[::-1])[::-1], (1, 0, 2))
    outputs = jnp.concatenate([out_f, out_b], axis=2)
    h_last = jnp.concatenate([out_f[:, -1, :], out_b[:, 0, :]], axis=1)
    return outputs, h_last


def _init_params(key, input_size, hidden_size):
    """PyTorch nn.Linear-style init: U(-1/sqrt(fan_in), +1/sqrt(fan_in))."""
    fan_in = input_size + hidden_size
    bound = 1.0 / float(fan_in) ** 0.5
    names = ["w_z", "b_z", "w_h", "b_h"]
    keys = jax.random.split(key, len(names))
    params = {}
    for name, k in zip(names, keys):
        shape = ((hidden_size, fan_in) if name.startswith("w")
                 else (hidden_size,))
        params[name] = jax.random.uniform(k, shape, jnp.float32, -bound, bound)
    return params


if __name__ == "__main__":
    B, T, I, H = 2, 8, 16, 32
    bidirectional = True

    key = jax.random.PRNGKey(0)
    kx, kp = jax.random.split(key)
    x = jax.random.normal(kx, (B, T, I), jnp.float32)
    params = _init_params(kp, I, H)

    outputs, h_last = min_gru_forward(x, params, bidirectional=bidirectional)
    outputs, h_last = jax.block_until_ready((outputs, h_last))

    ref_out, ref_h = _reference(x, params, bidirectional=bidirectional)

    nd = 2 if bidirectional else 1
    assert outputs.shape == (B, T, H * nd), outputs.shape
    assert h_last.shape == (B, H * nd), h_last.shape
    # bf16 matmuls + bf16 xproj storage vs full-f32 reference -> loose tol.
    assert jnp.allclose(outputs, ref_out, atol=5e-2, rtol=5e-2), float(
        jnp.max(jnp.abs(outputs - ref_out)))
    assert jnp.allclose(h_last, ref_h, atol=5e-2, rtol=5e-2), float(
        jnp.max(jnp.abs(h_last - ref_h)))

    # Also exercise the unidirectional path.
    out_u, h_u = min_gru_forward(x, params, bidirectional=False)
    out_u, h_u = jax.block_until_ready((out_u, h_u))
    ref_u, ref_hu = _reference(x, params, bidirectional=False)
    assert jnp.allclose(out_u, ref_u, atol=5e-2, rtol=5e-2), float(
        jnp.max(jnp.abs(out_u - ref_u)))
    assert jnp.allclose(h_u, ref_hu, atol=5e-2, rtol=5e-2)

    print("KERNEL_OK")
</pallas_src>

<mosaic_0001>
module attributes {stable_mosaic.version = 11 : i64} {
  func.func @_mingru_scan_kernel(%arg0: i32, %arg1: memref<2x8x256xbf16, #tpu.memory_space<vmem>>, %arg2: memref<2x8x256xbf16, #tpu.memory_space<vmem>>, %arg3: memref<128x256xbf16, #tpu.memory_space<vmem>>, %arg4: memref<2x8x128xf32, #tpu.memory_space<vmem>>, %arg5: memref<2x8x128xf32, #tpu.memory_space<vmem>>, %arg6: memref<4x128xf32, #tpu.memory_space<vmem>>) attributes {dimension_semantics = [#tpu.dimension_semantics<arbitrary>], iteration_bounds = array<i64: 1>, scalar_prefetch = 0 : i64, scratch_operands = 1 : i64, tpu.core_type = #tpu.core_type<tc>, window_params = [{transform_indices = @transform_0, window_bounds = array<i64: 2, 8, 256>}, {transform_indices = @transform_1, window_bounds = array<i64: 2, 8, 256>}, {pipeline_mode = #tpu.pipeline_mode<synchronous>, transform_indices = @transform_2, window_bounds = array<i64: 128, 256>}, {transform_indices = @transform_3, window_bounds = array<i64: 2, 8, 128>}, {transform_indices = @transform_4, window_bounds = array<i64: 2, 8, 128>}]} {
    %c0_i32 = arith.constant 0 : i32
    %0 = arith.cmpi eq, %arg0, %c0_i32 : i32
    %1 = arith.extui %0 : i1 to i32
    %c0_i32_0 = arith.constant 0 : i32
    %2 = arith.cmpi ne, %1, %c0_i32_0 : i32
    scf.if %2 {
      %cst_162 = arith.constant 0.000000e+00 : f32
      %364 = vector.broadcast %cst_162 : f32 to vector<4x128xf32>
      %c0_163 = arith.constant 0 : index
      %c0_164 = arith.constant 0 : index
      %365 = vector.load %arg6[%c0_163, %c0_164] : memref<4x128xf32, #tpu.memory_space<vmem>>, vector<4x128xf32>
      tpu.vector_store %arg6[%c0_163, %c0_164], %364 {strides = array<i32>} : memref<4x128xf32, #tpu.memory_space<vmem>>, vector<4x128xf32>,
    } else {
    }
    %c0 = arith.constant 0 : index
    %c0_1 = arith.constant 0 : index
    %3 = vector.load %arg3[%c0, %c0_1] : memref<128x256xbf16, #tpu.memory_space<vmem>>, vector<128x256xbf16>
    %c0_2 = arith.constant 0 : index
    %c0_3 = arith.constant 0 : index
    %4 = vector.load %arg6[%c0_2, %c0_3] : memref<4x128xf32, #tpu.memory_space<vmem>>, vector<4x128xf32>
    %5 = arith.truncf %4 : vector<4x128xf32> to vector<4x128xbf16>
    %cst = arith.constant dense<0.000000e+00> : vector<4x256xf32>
    %6 = tpu.matmul %5, %3, %cst {dimension_numbers = #tpu.dot_dimension_numbers<[1], [0], [0], [1], [0, 0, 1, 1], [], []>} : vector<4x128xbf16>, vector<128x256xbf16>, vector<4x256xf32> -> vector<4x256xf32>
    %7 = vector.extract_strided_slice %6 {offsets = [0, 0], sizes = [2, 256], strides = [1, 1]} : vector<4x256xf32> to vector<2x256xf32>
    %c0_4 = arith.constant 0 : index
    %c0_5 = arith.constant 0 : index
    %c0_6 = arith.constant 0 : index
    %8 = vector.load %arg1[%c0_4, %c0_5, %c0_6] : memref<2x8x256xbf16, #tpu.memory_space<vmem>>, vector<2x1x256xbf16>
    %9 = vector.shape_cast %8 : vector<2x1x256xbf16> to vector<2x256xbf16>
    %10 = arith.extf %9 : vector<2x256xbf16> to vector<2x256xf32>
    %11 = arith.addf %7, %10 : vector<2x256xf32>
    %12 = vector.extract_strided_slice %11 {offsets = [0, 0], sizes = [2, 128], strides = [1, 1]} : vector<2x256xf32> to vector<2x128xf32>
    %13 = arith.negf %12 : vector<2x128xf32>
    %14 = math.exp %13 : vector<2x128xf32>
    %cst_7 = arith.constant 1.000000e+00 : f32
    %15 = vector.broadcast %cst_7 : f32 to vector<2x128xf32>
    %16 = arith.addf %15, %14 : vector<2x128xf32>
    %17 = arith.divf %15, %16 : vector<2x128xf32>
    %18 = vector.extract_strided_slice %11 {offsets = [0, 128], sizes = [2, 128], strides = [1, 1]} : vector<2x256xf32> to vector<2x128xf32>
    %19 = math.tanh %18 : vector<2x128xf32>
    %20 = vector.extract_strided_slice %4 {offsets = [0, 0], sizes = [2, 128], strides = [1, 1]} : vector<4x128xf32> to vector<2x128xf32>
    %21 = arith.subf %19, %20 : vector<2x128xf32>
    %22 = arith.mulf %17, %21 : vector<2x128xf32>
    %23 = arith.addf %20, %22 : vector<2x128xf32>
    %c0_8 = arith.constant 0 : index
    %c0_9 = arith.constant 0 : index
    %24 = vector.load %arg6[%c0_8, %c0_9] : memref<4x128xf32, #tpu.memory_space<vmem>>, vector<2x128xf32>
    tpu.vector_store %arg6[%c0_8, %c0_9], %23 {strides = array<i32>} : memref<4x128xf32, #tpu.memory_space<vmem>>, vector<2x128xf32>,
    %c0_10 = arith.constant 0 : index
    %c0_11 = arith.constant 0 : index
    %c0_12 = arith.constant 0 : index
    %25 = vector.load %arg4[%c0_10, %c0_11, %c0_12] : memref<2x8x128xf32, #tpu.memory_space<vmem>>, vector<2x1x128xf32>
    %26 = vector.shape_cast %25 : vector<2x1x128xf32> to vector<2x128xf32>
    %27 = vector.shape_cast %23 : vector<2x128xf32> to vector<2x1x128xf32>
    tpu.vector_store %arg4[%c0_10, %c0_11, %c0_12], %27 {strides = array<i32>} : memref<2x8x128xf32, #tpu.memory_space<vmem>>, vector<2x1x128xf32>,
    %28 = vector.extract_strided_slice %6 {offsets = [2, 0], sizes = [2, 256], strides = [1, 1]} : vector<4x256xf32> to vector<2x256xf32>
    %c0_13 = arith.constant 0 : index
    %c7 = arith.constant 7 : index
    %c0_14 = arith.constant 0 : index
    %29 = vector.load %arg2[%c0_13, %c7, %c0_14] : memref<2x8x256xbf16, #tpu.memory_space<vmem>>, vector<2x1x256xbf16>
    %30 = vector.shape_cast %29 : vector<2x1x256xbf16> to vector<2x256xbf16>
    %31 = arith.extf %30 : vector<2x256xbf16> to vector<2x256xf32>
    %32 = arith.addf %28, %31 : vector<2x256xf32>
    %33 = vector.extract_strided_slice %32 {offsets = [0, 0], sizes = [2, 128], strides = [1, 1]} : vector<2x256xf32> to vector<2x128xf32>
    %34 = arith.negf %33 : vector<2x128xf32>
    %35 = math.exp %34 : vector<2x128xf32>
    %cst_15 = arith.constant 1.000000e+00 : f32
    %36 = vector.broadcast %cst_15 : f32 to vector<2x128xf32>
    %37 = arith.addf %36, %35 : vector<2x128xf32>
    %38 = arith.divf %36, %37 : vector<2x128xf32>
    %39 = vector.extract_strided_slice %32 {offsets = [0, 128], sizes = [2, 128], strides = [1, 1]} : vector<2x256xf32> to vector<2x128xf32>
    %40 = math.tanh %39 : vector<2x128xf32>
    %41 = vector.extract_strided_slice %4 {offsets = [2, 0], sizes = [2, 128], strides = [1, 1]} : vector<4x128xf32> to vector<2x128xf32>
    %42 = arith.subf %40, %41 : vector<2x128xf32>
    %43 = arith.mulf %38, %42 : vector<2x128xf32>
    %44 = arith.addf %41, %43 : vector<2x128xf32>
    %c2 = arith.constant 2 : index
    %c0_16 = arith.constant 0 : index
    %45 = vector.load %arg6[%c2, %c0_16] : memref<4x128xf32, #tpu.memory_space<vmem>>, vector<2x128xf32>
    tpu.vector_store %arg6[%c2, %c0_16], %44 {strides = array<i32>} : memref<4x128xf32, #tpu.memory_space<vmem>>, vector<2x128xf32>,
    %c0_17 = arith.constant 0 : index
    %c7_18 = arith.constant 7 : index
    %c0_19 = arith.constant 0 : index
    %46 = vector.load %arg5[%c0_17, %c7_18, %c0_19] : memref<2x8x128xf32, #tpu.memory_space<vmem>>, vector<2x1x128xf32>
    %47 = vector.shape_cast %46 : vector<2x1x128xf32> to vector<2x128xf32>
    %48 = vector.shape_cast %44 : vector<2x128xf32> to vector<2x1x128xf32>
    tpu.vector_store %arg5[%c0_17, %c7_18, %c0_19], %48 {strides = array<i32>} : memref<2x8x128xf32, #tpu.memory_space<vmem>>, vector<2x1x128xf32>,
    %c0_20 = arith.constant 0 : index
    %c0_21 = arith.constant 0 : index
    %49 = vector.load %arg6[%c0_20, %c0_21] : memref<4x128xf32, #tpu.memory_space<vmem>>, vector<4x128xf32>
    %50 = arith.truncf %49 : vector<4x128xf32> to vector<4x128xbf16>
    %cst_22 = arith.constant dense<0.000000e+00> : vector<4x256xf32>
    %51 = tpu.matmul %50, %3, %cst_22 {dimension_numbers = #tpu.dot_dimension_numbers<[1], [0], [0], [1], [0, 0, 1, 1], [], []>} : vector<4x128xbf16>, vector<128x256xbf16>, vector<4x256xf32> -> vector<4x256xf32>
    %52 = vector.extract_strided_slice %51 {offsets = [0, 0], sizes = [2, 256], strides = [1, 1]} : vector<4x256xf32> to vector<2x256xf32>
    %c0_23 = arith.constant 0 : index
    %c1 = arith.constant 1 : index
    %c0_24 = arith.constant 0 : index
    %53 = vector.load %arg1[%c0_23, %c1, %c0_24] : memref<2x8x256xbf16, #tpu.memory_space<vmem>>, vector<2x1x256xbf16>
    %54 = vector.shape_cast %53 : vector<2x1x256xbf16> to vector<2x256xbf16>
    %55 = arith.extf %54 : vector<2x256xbf16> to vector<2x256xf32>
    %56 = arith.addf %52, %55 : vector<2x256xf32>
    %57 = vector.extract_strided_slice %56 {offsets = [0, 0], sizes = [2, 128], strides = [1, 1]} : vector<2x256xf32> to vector<2x128xf32>
    %58 = arith.negf %57 : vector<2x128xf32>
    %59 = math.exp %58 : vector<2x128xf32>
    %cst_25 = arith.constant 1.000000e+00 : f32
    %60 = vector.broadcast %cst_25 : f32 to vector<2x128xf32>
    %61 = arith.addf %60, %59 : vector<2x128xf32>
    %62 = arith.divf %60, %61 : vector<2x128xf32>
    %63 = vector.extract_strided_slice %56 {offsets = [0, 128], sizes = [2, 128], strides = [1, 1]} : vector<2x256xf32> to vector<2x128xf32>
    %64 = math.tanh %63 : vector<2x128xf32>
    %65 = vector.extract_strided_slice %49 {offsets = [0, 0], sizes = [2, 128], strides = [1, 1]} : vector<4x128xf32> to vector<2x128xf32>
    %66 = arith.subf %64, %65 : vector<2x128xf32>
    %67 = arith.mulf %62, %66 : vector<2x128xf32>
    %68 = arith.addf %65, %67 : vector<2x128xf32>
    %c0_26 = arith.constant 0 : index
    %c0_27 = arith.constant 0 : index
    %69 = vector.load %arg6[%c0_26, %c0_27] : memref<4x128xf32, #tpu.memory_space<vmem>>, vector<2x128xf32>
    tpu.vector_store %arg6[%c0_26, %c0_27], %68 {strides = array<i32>} : memref<4x128xf32, #tpu.memory_space<vmem>>, vector<2x128xf32>,
    %c0_28 = arith.constant 0 : index
    %c1_29 = arith.constant 1 : index
    %c0_30 = arith.constant 0 : index
    %70 = vector.load %arg4[%c0_28, %c1_29, %c0_30] : memref<2x8x128xf32, #tpu.memory_space<vmem>>, vector<2x1x128xf32>
    %71 = vector.shape_cast %70 : vector<2x1x128xf32> to vector<2x128xf32>
    %72 = vector.shape_cast %68 : vector<2x128xf32> to vector<2x1x128xf32>
    tpu.vector_store %arg4[%c0_28, %c1_29, %c0_30], %72 {strides = array<i32>} : memref<2x8x128xf32, #tpu.memory_space<vmem>>, vector<2x1x128xf32>,
    %73 = vector.extract_strided_slice %51 {offsets = [2, 0], sizes = [2, 256], strides = [1, 1]} : vector<4x256xf32> to vector<2x256xf32>
    %c0_31 = arith.constant 0 : index
    %c6 = arith.constant 6 : index
    %c0_32 = arith.constant 0 : index
    %74 = vector.load %arg2[%c0_31, %c6, %c0_32] : memref<2x8x256xbf16, #tpu.memory_space<vmem>>, vector<2x1x256xbf16>
    %75 = vector.shape_cast %74 : vector<2x1x256xbf16> to vector<2x256xbf16>
    %76 = arith.extf %75 : vector<2x256xbf16> to vector<2x256xf32>
    %77 = arith.addf %73, %76 : vector<2x256xf32>
    %78 = vector.extract_strided_slice %77 {offsets = [0, 0], sizes = [2, 128], strides = [1, 1]} : vector<2x256xf32> to vector<2x128xf32>
    %79 = arith.negf %78 : vector<2x128xf32>
    %80 = math.exp %79 : vector<2x128xf32>
    %cst_33 = arith.constant 1.000000e+00 : f32
    %81 = vector.broadcast %cst_33 : f32 to vector<2x128xf32>
    %82 = arith.addf %81, %80 : vector<2x128xf32>
    %83 = arith.divf %81, %82 : vector<2x128xf32>
    %84 = vector.extract_strided_slice %77 {offsets = [0, 128], sizes = [2, 128], strides = [1, 1]} : vector<2x256xf32> to vector<2x128xf32>
    %85 = math.tanh %84 : vector<2x128xf32>
    %86 = vector.extract_strided_slice %49 {offsets = [2, 0], sizes = [2, 128], strides = [1, 1]} : vector<4x128xf32> to vector<2x128xf32>
    %87 = arith.subf %85, %86 : vector<2x128xf32>
    %88 = arith.mulf %83, %87 : vector<2x128xf32>
    %89 = arith.addf %86, %88 : vector<2x128xf32>
    %c2_34 = arith.constant 2 : index
    %c0_35 = arith.constant 0 : index
    %90 = vector.load %arg6[%c2_34, %c0_35] : memref<4x128xf32, #tpu.memory_space<vmem>>, vector<2x128xf32>
    tpu.vector_store %arg6[%c2_34, %c0_35], %89 {strides = array<i32>} : memref<4x128xf32, #tpu.memory_space<vmem>>, vector<2x128xf32>,
    %c0_36 = arith.constant 0 : index
    %c6_37 = arith.constant 6 : index
    %c0_38 = arith.constant 0 : index
    %91 = vector.load %arg5[%c0_36, %c6_37, %c0_38] : memref<2x8x128xf32, #tpu.memory_space<vmem>>, vector<2x1x128xf32>
    %92 = vector.shape_cast %91 : vector<2x1x128xf32> to vector<2x128xf32>
    %93 = vector.shape_cast %89 : vector<2x128xf32> to vector<2x1x128xf32>
    tpu.vector_store %arg5[%c0_36, %c6_37, %c0_38], %93 {strides = array<i32>} : memref<2x8x128xf32, #tpu.memory_space<vmem>>, vector<2x1x128xf32>,
    %c0_39 = arith.constant 0 : index
    %c0_40 = arith.constant 0 : index
    %94 = vector.load %arg6[%c0_39, %c0_40] : memref<4x128xf32, #tpu.memory_space<vmem>>, vector<4x128xf32>
    %95 = arith.truncf %94 : vector<4x128xf32> to vector<4x128xbf16>
    %cst_41 = arith.constant dense<0.000000e+00> : vector<4x256xf32>
    %96 = tpu.matmul %95, %3, %cst_41 {dimension_numbers = #tpu.dot_dimension_numbers<[1], [0], [0], [1], [0, 0, 1, 1], [], []>} : vector<4x128xbf16>, vector<128x256xbf16>, vector<4x256xf32> -> vector<4x256xf32>
    %97 = vector.extract_strided_slice %96 {offsets = [0, 0], sizes = [2, 256], strides = [1, 1]} : vector<4x256xf32> to vector<2x256xf32>
    %c0_42 = arith.constant 0 : index
    %c2_43 = arith.constant 2 : index
    %c0_44 = arith.constant 0 : index
    %98 = vector.load %arg1[%c0_42, %c2_43, %c0_44] : memref<2x8x256xbf16, #tpu.memory_space<vmem>>, vector<2x1x256xbf16>
    %99 = vector.shape_cast %98 : vector<2x1x256xbf16> to vector<2x256xbf16>
    %100 = arith.extf %99 : vector<2x256xbf16> to vector<2x256xf32>
    %101 = arith.addf %97, %100 : vector<2x256xf32>
    %102 = vector.extract_strided_slice %101 {offsets = [0, 0], sizes = [2, 128], strides = [1, 1]} : vector<2x256xf32> to vector<2x128xf32>
    %103 = arith.negf %102 : vector<2x128xf32>
    %104 = math.exp %103 : vector<2x128xf32>
    %cst_45 = arith.constant 1.000000e+00 : f32
    %105 = vector.broadcast %cst_45 : f32 to vector<2x128xf32>
    %106 = arith.addf %105, %104 : vector<2x128xf32>
    %107 = arith.divf %105, %106 : vector<2x128xf32>
    %108 = vector.extract_strided_slice %101 {offsets = [0, 128], sizes = [2, 128], strides = [1, 1]} : vector<2x256xf32> to vector<2x128xf32>
    %109 = math.tanh %108 : vector<2x128xf32>
    %110 = vector.extract_strided_slice %94 {offsets = [0, 0], sizes = [2, 128], strides = [1, 1]} : vector<4x128xf32> to vector<2x128xf32>
    %111 = arith.subf %109, %110 : vector<2x128xf32>
    %112 = arith.mulf %107, %111 : vector<2x128xf32>
    %113 = arith.addf %110, %112 : vector<2x128xf32>
    %c0_46 = arith.constant 0 : index
    %c0_47 = arith.constant 0 : index
    %114 = vector.load %arg6[%c0_46, %c0_47] : memref<4x128xf32, #tpu.memory_space<vmem>>, vector<2x128xf32>
    tpu.vector_store %arg6[%c0_46, %c0_47], %113 {strides = array<i32>} : memref<4x128xf32, #tpu.memory_space<vmem>>, vector<2x128xf32>,
    %c0_48 = arith.constant 0 : index
    %c2_49 = arith.constant 2 : index
    %c0_50 = arith.constant 0 : index
    %115 = vector.load %arg4[%c0_48, %c2_49, %c0_50] : memref<2x8x128xf32, #tpu.memory_space<vmem>>, vector<2x1x128xf32>
    %116 = vector.shape_cast %115 : vector<2x1x128xf32> to vector<2x128xf32>
    %117 = vector.shape_cast %113 : vector<2x128xf32> to vector<2x1x128xf32>
    tpu.vector_store %arg4[%c0_48, %c2_49, %c0_50], %117 {strides = array<i32>} : memref<2x8x128xf32, #tpu.memory_space<vmem>>, vector<2x1x128xf32>,
    %118 = vector.extract_strided_slice %96 {offsets = [2, 0], sizes = [2, 256], strides = [1, 1]} : vector<4x256xf32> to vector<2x256xf32>
    %c0_51 = arith.constant 0 : index
    %c5 = arith.constant 5 : index
    %c0_52 = arith.constant 0 : index
    %119 = vector.load %arg2[%c0_51, %c5, %c0_52] : memref<2x8x256xbf16, #tpu.memory_space<vmem>>, vector<2x1x256xbf16>
    %120 = vector.shape_cast %119 : vector<2x1x256xbf16> to vector<2x256xbf16>
    %121 = arith.extf %120 : vector<2x256xbf16> to vector<2x256xf32>
    %122 = arith.addf %118, %121 : vector<2x256xf32>
    %123 = vector.extract_strided_slice %122 {offsets = [0, 0], sizes = [2, 128], strides = [1, 1]} : vector<2x256xf32> to vector<2x128xf32>
    %124 = arith.negf %123 : vector<2x128xf32>
    %125 = math.exp %124 : vector<2x128xf32>
    %cst_53 = arith.constant 1.000000e+00 : f32
    %126 = vector.broadcast %cst_53 : f32 to vector<2x128xf32>
    %127 = arith.addf %126, %125 : vector<2x128xf32>
    %128 = arith.divf %126, %127 : vector<2x128xf32>
    %129 = vector.extract_strided_slice %122 {offsets = [0, 128], sizes = [2, 128], strides = [1, 1]} : vector<2x256xf32> to vector<2x128xf32>
    %130 = math.tanh %129 : vector<2x128xf32>
    %131 = vector.extract_strided_slice %94 {offsets = [2, 0], sizes = [2, 128], strides = [1, 1]} : vector<4x128xf32> to vector<2x128xf32>
    %132 = arith.subf %130, %131 : vector<2x128xf32>
    %133 = arith.mulf %128, %132 : vector<2x128xf32>
    %134 = arith.addf %131, %133 : vector<2x128xf32>
    %c2_54 = arith.constant 2 : index
    %c0_55 = arith.constant 0 : index
    %135 = vector.load %arg6[%c2_54, %c0_55] : memref<4x128xf32, #tpu.memory_space<vmem>>, vector<2x128xf32>
    tpu.vector_store %arg6[%c2_54, %c0_55], %134 {strides = array<i32>} : memref<4x128xf32, #tpu.memory_space<vmem>>, vector<2x128xf32>,
    %c0_56 = arith.constant 0 : index
    %c5_57 = arith.constant 5 : index
    %c0_58 = arith.constant 0 : index
    %136 = vector.load %arg5[%c0_56, %c5_57, %c0_58] : memref<2x8x128xf32, #tpu.memory_space<vmem>>, vector<2x1x128xf32>
    %137 = vector.shape_cast %136 : vector<2x1x128xf32> to vector<2x128xf32>
    %138 = vector.shape_cast %134 : vector<2x128xf32> to vector<2x1x128xf32>
    tpu.vector_store %arg5[%c0_56, %c5_57, %c0_58], %138 {strides = array<i32>} : memref<2x8x128xf32, #tpu.memory_space<vmem>>, vector<2x1x128xf32>,
    %c0_59 = arith.constant 0 : index
    %c0_60 = arith.constant 0 : index
    %139 = vector.load %arg6[%c0_59, %c0_60] : memref<4x128xf32, #tpu.memory_space<vmem>>, vector<4x128xf32>
    %140 = arith.truncf %139 : vector<4x128xf32> to vector<4x128xbf16>
    %cst_61 = arith.constant dense<0.000000e+00> : vector<4x256xf32>
    %141 = tpu.matmul %140, %3, %cst_61 {dimension_numbers = #tpu.dot_dimension_numbers<[1], [0], [0], [1], [0, 0, 1, 1], [], []>} : vector<4x128xbf16>, vector<128x256xbf16>, vector<4x256xf32> -> vector<4x256xf32>
    %142 = vector.extract_strided_slice %141 {offsets = [0, 0], sizes = [2, 256], strides = [1, 1]} : vector<4x256xf32> to vector<2x256xf32>
    %c0_62 = arith.constant 0 : index
    %c3 = arith.constant 3 : index
    %c0_63 = arith.constant 0 : index
    %143 = vector.load %arg1[%c0_62, %c3, %c0_63] : memref<2x8x256xbf16, #tpu.memory_space<vmem>>, vector<2x1x256xbf16>
    %144 = vector.shape_cast %143 : vector<2x1x256xbf16> to vector<2x256xbf16>
    %145 = arith.extf %144 : vector<2x256xbf16> to vector<2x256xf32>
    %146 = arith.addf %142, %145 : vector<2x256xf32>
    %147 = vector.extract_strided_slice %146 {offsets = [0, 0], sizes = [2, 128], strides = [1, 1]} : vector<2x256xf32> to vector<2x128xf32>
    %148 = arith.negf %147 : vector<2x128xf32>
    %149 = math.exp %148 : vector<2x128xf32>
    %cst_64 = arith.constant 1.000000e+00 : f32
    %150 = vector.broadcast %cst_64 : f32 to vector<2x128xf32>
    %151 = arith.addf %150, %149 : vector<2x128xf32>
    %152 = arith.divf %150, %151 : vector<2x128xf32>
    %153 = vector.extract_strided_slice %146 {offsets = [0, 128], sizes = [2, 128], strides = [1, 1]} : vector<2x256xf32> to vector<2x128xf32>
    %154 = math.tanh %153 : vector<2x128xf32>
    %155 = vector.extract_strided_slice %139 {offsets = [0, 0], sizes = [2, 128], strides = [1, 1]} : vector<4x128xf32> to vector<2x128xf32>
    %156 = arith.subf %154, %155 : vector<2x128xf32>
    %157 = arith.mulf %152, %156 : vector<2x128xf32>
    %158 = arith.addf %155, %157 : vector<2x128xf32>
    %c0_65 = arith.constant 0 : index
    %c0_66 = arith.constant 0 : index
    %159 = vector.load %arg6[%c0_65, %c0_66] : memref<4x128xf32, #tpu.memory_space<vmem>>, vector<2x128xf32>
    tpu.vector_store %arg6[%c0_65, %c0_66], %158 {strides = array<i32>} : memref<4x128xf32, #tpu.memory_space<vmem>>, vector<2x128xf32>,
    %c0_67 = arith.constant 0 : index
    %c3_68 = arith.constant 3 : index
    %c0_69 = arith.constant 0 : index
    %160 = vector.load %arg4[%c0_67, %c3_68, %c0_69] : memref<2x8x128xf32, #tpu.memory_space<vmem>>, vector<2x1x128xf32>
    %161 = vector.shape_cast %160 : vector<2x1x128xf32> to vector<2x128xf32>
    %162 = vector.shape_cast %158 : vector<2x128xf32> to vector<2x1x128xf32>
    tpu.vector_store %arg4[%c0_67, %c3_68, %c0_69], %162 {strides = array<i32>} : memref<2x8x128xf32, #tpu.memory_space<vmem>>, vector<2x1x128xf32>,
    %163 = vector.extract_strided_slice %141 {offsets = [2, 0], sizes = [2, 256], strides = [1, 1]} : vector<4x256xf32> to vector<2x256xf32>
    %c0_70 = arith.constant 0 : index
    %c4 = arith.constant 4 : index
    %c0_71 = arith.constant 0 : index
    %164 = vector.load %arg2[%c0_70, %c4, %c0_71] : memref<2x8x256xbf16, #tpu.memory_space<vmem>>, vector<2x1x256xbf16>
    %165 = vector.shape_cast %164 : vector<2x1x256xbf16> to vector<2x256xbf16>
    %166 = arith.extf %165 : vector<2x256xbf16> to vector<2x256xf32>
    %167 = arith.addf %163, %166 : vector<2x256xf32>
    %168 = vector.extract_strided_slice %167 {offsets = [0, 0], sizes = [2, 128], strides = [1, 1]} : vector<2x256xf32> to vector<2x128xf32>
    %169 = arith.negf %168 : vector<2x128xf32>
    %170 = math.exp %169 : vector<2x128xf32>
    %cst_72 = arith.constant 1.000000e+00 : f32
    %171 = vector.broadcast %cst_72 : f32 to vector<2x128xf32>
    %172 = arith.addf %171, %170 : vector<2x128xf32>
    %173 = arith.divf %171, %172 : vector<2x128xf32>
    %174 = vector.extract_strided_slice %167 {offsets = [0, 128], sizes = [2, 128], strides = [1, 1]} : vector<2x256xf32> to vector<2x128xf32>
    %175 = math.tanh %174 : vector<2x128xf32>
    %176 = vector.extract_strided_slice %139 {offsets = [2, 0], sizes = [2, 128], strides = [1, 1]} : vector<4x128xf32> to vector<2x128xf32>
    %177 = arith.subf %175, %176 : vector<2x128xf32>
    %178 = arith.mulf %173, %177 : vector<2x128xf32>
    %179 = arith.addf %176, %178 : vector<2x128xf32>
    %c2_73 = arith.constant 2 : index
    %c0_74 = arith.constant 0 : index
    %180 = vector.load %arg6[%c2_73, %c0_74] : memref<4x128xf32, #tpu.memory_space<vmem>>, vector<2x128xf32>
    tpu.vector_store %arg6[%c2_73, %c0_74], %179 {strides = array<i32>} : memref<4x128xf32, #tpu.memory_space<vmem>>, vector<2x128xf32>,
    %c0_75 = arith.constant 0 : index
    %c4_76 = arith.constant 4 : index
    %c0_77 = arith.constant 0 : index
    %181 = vector.load %arg5[%c0_75, %c4_76, %c0_77] : memref<2x8x128xf32, #tpu.memory_space<vmem>>, vector<2x1x128xf32>
    %182 = vector.shape_cast %181 : vector<2x1x128xf32> to vector<2x128xf32>
    %183 = vector.shape_cast %179 : vector<2x128xf32> to vector<2x1x128xf32>
    tpu.vector_store %arg5[%c0_75, %c4_76, %c0_77], %183 {strides = array<i32>} : memref<2x8x128xf32, #tpu.memory_space<vmem>>, vector<2x1x128xf32>,
    %c0_78 = arith.constant 0 : index
    %c0_79 = arith.constant 0 : index
    %184 = vector.load %arg6[%c0_78, %c0_79] : memref<4x128xf32, #tpu.memory_space<vmem>>, vector<4x128xf32>
    %185 = arith.truncf %184 : vector<4x128xf32> to vector<4x128xbf16>
    %cst_80 = arith.constant dense<0.000000e+00> : vector<4x256xf32>
    %186 = tpu.matmul %185, %3, %cst_80 {dimension_numbers = #tpu.dot_dimension_numbers<[1], [0], [0], [1], [0, 0, 1, 1], [], []>} : vector<4x128xbf16>, vector<128x256xbf16>, vector<4x256xf32> -> vector<4x256xf32>
    %187 = vector.extract_strided_slice %186 {offsets = [0, 0], sizes = [2, 256], strides = [1, 1]} : vector<4x256xf32> to vector<2x256xf32>
    %c0_81 = arith.constant 0 : index
    %c4_82 = arith.constant 4 : index
    %c0_83 = arith.constant 0 : index
    %188 = vector.load %arg1[%c0_81, %c4_82, %c0_83] : memref<2x8x256xbf16, #tpu.memory_space<vmem>>, vector<2x1x256xbf16>
    %189 = vector.shape_cast %188 : vector<2x1x256xbf16> to vector<2x256xbf16>
    %190 = arith.extf %189 : vector<2x256xbf16> to vector<2x256xf32>
    %191 = arith.addf %187, %190 : vector<2x256xf32>
    %192 = vector.extract_strided_slice %191 {offsets = [0, 0], sizes = [2, 128], strides = [1, 1]} : vector<2x256xf32> to vector<2x128xf32>
    %193 = arith.negf %192 : vector<2x128xf32>
    %194 = math.exp %193 : vector<2x128xf32>
    %cst_84 = arith.constant 1.000000e+00 : f32
    %195 = vector.broadcast %cst_84 : f32 to vector<2x128xf32>
    %196 = arith.addf %195, %194 : vector<2x128xf32>
    %197 = arith.divf %195, %196 : vector<2x128xf32>
    %198 = vector.extract_strided_slice %191 {offsets = [0, 128], sizes = [2, 128], strides = [1, 1]} : vector<2x256xf32> to vector<2x128xf32>
    %199 = math.tanh %198 : vector<2x128xf32>
    %200 = vector.extract_strided_slice %184 {offsets = [0, 0], sizes = [2, 128], strides = [1, 1]} : vector<4x128xf32> to vector<2x128xf32>
    %201 = arith.subf %199, %200 : vector<2x128xf32>
    %202 = arith.mulf %197, %201 : vector<2x128xf32>
    %203 = arith.addf %200, %202 : vector<2x128xf32>
    %c0_85 = arith.constant 0 : index
    %c0_86 = arith.constant 0 : index
    %204 = vector.load %arg6[%c0_85, %c0_86] : memref<4x128xf32, #tpu.memory_space<vmem>>, vector<2x128xf32>
    tpu.vector_store %arg6[%c0_85, %c0_86], %203 {strides = array<i32>} : memref<4x128xf32, #tpu.memory_space<vmem>>, vector<2x128xf32>,
    %c0_87 = arith.constant 0 : index
    %c4_88 = arith.constant 4 : index
    %c0_89 = arith.constant 0 : index
    %205 = vector.load %arg4[%c0_87, %c4_88, %c0_89] : memref<2x8x128xf32, #tpu.memory_space<vmem>>, vector<2x1x128xf32>
    %206 = vector.shape_cast %205 : vector<2x1x128xf32> to vector<2x128xf32>
    %207 = vector.shape_cast %203 : vector<2x128xf32> to vector<2x1x128xf32>
    tpu.vector_store %arg4[%c0_87, %c4_88, %c0_89], %207 {strides = array<i32>} : memref<2x8x128xf32, #tpu.memory_space<vmem>>, vector<2x1x128xf32>,
    %208 = vector.extract_strided_slice %186 {offsets = [2, 0], sizes = [2, 256], strides = [1, 1]} : vector<4x256xf32> to vector<2x256xf32>
    %c0_90 = arith.constant 0 : index
    %c3_91 = arith.constant 3 : index
    %c0_92 = arith.constant 0 : index
    %209 = vector.load %arg2[%c0_90, %c3_91, %c0_92] : memref<2x8x256xbf16, #tpu.memory_space<vmem>>, vector<2x1x256xbf16>
    %210 = vector.shape_cast %209 : vector<2x1x256xbf16> to vector<2x256xbf16>
    %211 = arith.extf %210 : vector<2x256xbf16> to vector<2x256xf32>
    %212 = arith.addf %208, %211 : vector<2x256xf32>
    %213 = vector.extract_strided_slice %212 {offsets = [0, 0], sizes = [2, 128], strides = [1, 1]} : vector<2x256xf32> to vector<2x128xf32>
    %214 = arith.negf %213 : vector<2x128xf32>
    %215 = math.exp %214 : vector<2x128xf32>
    %cst_93 = arith.constant 1.000000e+00 : f32
    %216 = vector.broadcast %cst_93 : f32 to vector<2x128xf32>
    %217 = arith.addf %216, %215 : vector<2x128xf32>
    %218 = arith.divf %216, %217 : vector<2x128xf32>
    %219 = vector.extract_strided_slice %212 {offsets = [0, 128], sizes = [2, 128], strides = [1, 1]} : vector<2x256xf32> to vector<2x128xf32>
    %220 = math.tanh %219 : vector<2x128xf32>
    %221 = vector.extract_strided_slice %184 {offsets = [2, 0], sizes = [2, 128], strides = [1, 1]} : vector<4x128xf32> to vector<2x128xf32>
    %222 = arith.subf %220, %221 : vector<2x128xf32>
    %223 = arith.mulf %218, %222 : vector<2x128xf32>
    %224 = arith.addf %221, %223 : vector<2x128xf32>
    %c2_94 = arith.constant 2 : index
    %c0_95 = arith.constant 0 : index
    %225 = vector.load %arg6[%c2_94, %c0_95] : memref<4x128xf32, #tpu.memory_space<vmem>>, vector<2x128xf32>
    tpu.vector_store %arg6[%c2_94, %c0_95], %224 {strides = array<i32>} : memref<4x128xf32, #tpu.memory_space<vmem>>, vector<2x128xf32>,
    %c0_96 = arith.constant 0 : index
    %c3_97 = arith.constant 3 : index
    %c0_98 = arith.constant 0 : index
    %226 = vector.load %arg5[%c0_96, %c3_97, %c0_98] : memref<2x8x128xf32, #tpu.memory_space<vmem>>, vector<2x1x128xf32>
    %227 = vector.shape_cast %226 : vector<2x1x128xf32> to vector<2x128xf32>
    %228 = vector.shape_cast %224 : vector<2x128xf32> to vector<2x1x128xf32>
    tpu.vector_store %arg5[%c0_96, %c3_97, %c0_98], %228 {strides = array<i32>} : memref<2x8x128xf32, #tpu.memory_space<vmem>>, vector<2x1x128xf32>,
    %c0_99 = arith.constant 0 : index
    %c0_100 = arith.constant 0 : index
    %229 = vector.load %arg6[%c0_99, %c0_100] : memref<4x128xf32, #tpu.memory_space<vmem>>, vector<4x128xf32>
    %230 = arith.truncf %229 : vector<4x128xf32> to vector<4x128xbf16>
    %cst_101 = arith.constant dense<0.000000e+00> : vector<4x256xf32>
    %231 = tpu.matmul %230, %3, %cst_101 {dimension_numbers = #tpu.dot_dimension_numbers<[1], [0], [0], [1], [0, 0, 1, 1], [], []>} : vector<4x128xbf16>, vector<128x256xbf16>, vector<4x256xf32> -> vector<4x256xf32>
    %232 = vector.extract_strided_slice %231 {offsets = [0, 0], sizes = [2, 256], strides = [1, 1]} : vector<4x256xf32> to vector<2x256xf32>
    %c0_102 = arith.constant 0 : index
    %c5_103 = arith.constant 5 : index
    %c0_104 = arith.constant 0 : index
    %233 = vector.load %arg1[%c0_102, %c5_103, %c0_104] : memref<2x8x256xbf16, #tpu.memory_space<vmem>>, vector<2x1x256xbf16>
    %234 = vector.shape_cast %233 : vector<2x1x256xbf16> to vector<2x256xbf16>
    %235 = arith.extf %234 : vector<2x256xbf16> to vector<2x256xf32>
    %236 = arith.addf %232, %235 : vector<2x256xf32>
    %237 = vector.extract_strided_slice %236 {offsets = [0, 0], sizes = [2, 128], strides = [1, 1]} : vector<2x256xf32> to vector<2x128xf32>
    %238 = arith.negf %237 : vector<2x128xf32>
    %239 = math.exp %238 : vector<2x128xf32>
    %cst_105 = arith.constant 1.000000e+00 : f32
    %240 = vector.broadcast %cst_105 : f32 to vector<2x128xf32>
    %241 = arith.addf %240, %239 : vector<2x128xf32>
    %242 = arith.divf %240, %241 : vector<2x128xf32>
    %243 = vector.extract_strided_slice %236 {offsets = [0, 128], sizes = [2, 128], strides = [1, 1]} : vector<2x256xf32> to vector<2x128xf32>
    %244 = math.tanh %243 : vector<2x128xf32>
    %245 = vector.extract_strided_slice %229 {offsets = [0, 0], sizes = [2, 128], strides = [1, 1]} : vector<4x128xf32> to vector<2x128xf32>
    %246 = arith.subf %244, %245 : vector<2x128xf32>
    %247 = arith.mulf %242, %246 : vector<2x128xf32>
    %248 = arith.addf %245, %247 : vector<2x128xf32>
    %c0_106 = arith.constant 0 : index
    %c0_107 = arith.constant 0 : index
    %249 = vector.load %arg6[%c0_106, %c0_107] : memref<4x128xf32, #tpu.memory_space<vmem>>, vector<2x128xf32>
    tpu.vector_store %arg6[%c0_106, %c0_107], %248 {strides = array<i32>} : memref<4x128xf32, #tpu.memory_space<vmem>>, vector<2x128xf32>,
    %c0_108 = arith.constant 0 : index
    %c5_109 = arith.constant 5 : index
    %c0_110 = arith.constant 0 : index
    %250 = vector.load %arg4[%c0_108, %c5_109, %c0_110] : memref<2x8x128xf32, #tpu.memory_space<vmem>>, vector<2x1x128xf32>
    %251 = vector.shape_cast %250 : vector<2x1x128xf32> to vector<2x128xf32>
    %252 = vector.shape_cast %248 : vector<2x128xf32> to vector<2x1x128xf32>
    tpu.vector_store %arg4[%c0_108, %c5_109, %c0_110], %252 {strides = array<i32>} : memref<2x8x128xf32, #tpu.memory_space<vmem>>, vector<2x1x128xf32>,
    %253 = vector.extract_strided_slice %231 {offsets = [2, 0], sizes = [2, 256], strides = [1, 1]} : vector<4x256xf32> to vector<2x256xf32>
    %c0_111 = arith.constant 0 : index
    %c2_112 = arith.constant 2 : index
    %c0_113 = arith.constant 0 : index
    %254 = vector.load %arg2[%c0_111, %c2_112, %c0_113] : memref<2x8x256xbf16, #tpu.memory_space<vmem>>, vector<2x1x256xbf16>
    %255 = vector.shape_cast %254 : vector<2x1x256xbf16> to vector<2x256xbf16>
    %256 = arith.extf %255 : vector<2x256xbf16> to vector<2x256xf32>
    %257 = arith.addf %253, %256 : vector<2x256xf32>
    %258 = vector.extract_strided_slice %257 {offsets = [0, 0], sizes = [2, 128], strides = [1, 1]} : vector<2x256xf32> to vector<2x128xf32>
    %259 = arith.negf %258 : vector<2x128xf32>
    %260 = math.exp %259 : vector<2x128xf32>
    %cst_114 = arith.constant 1.000000e+00 : f32
    %261 = vector.broadcast %cst_114 : f32 to vector<2x128xf32>
    %262 = arith.addf %261, %260 : vector<2x128xf32>
    %263 = arith.divf %261, %262 : vector<2x128xf32>
    %264 = vector.extract_strided_slice %257 {offsets = [0, 128], sizes = [2, 128], strides = [1, 1]} : vector<2x256xf32> to vector<2x128xf32>
    %265 = math.tanh %264 : vector<2x128xf32>
    %266 = vector.extract_strided_slice %229 {offsets = [2, 0], sizes = [2, 128], strides = [1, 1]} : vector<4x128xf32> to vector<2x128xf32>
    %267 = arith.subf %265, %266 : vector<2x128xf32>
    %268 = arith.mulf %263, %267 : vector<2x128xf32>
    %269 = arith.addf %266, %268 : vector<2x128xf32>
    %c2_115 = arith.constant 2 : index
    %c0_116 = arith.constant 0 : index
    %270 = vector.load %arg6[%c2_115, %c0_116] : memref<4x128xf32, #tpu.memory_space<vmem>>, vector<2x128xf32>
    tpu.vector_store %arg6[%c2_115, %c0_116], %269 {strides = array<i32>} : memref<4x128xf32, #tpu.memory_space<vmem>>, vector<2x128xf32>,
    %c0_117 = arith.constant 0 : index
    %c2_118 = arith.constant 2 : index
    %c0_119 = arith.constant 0 : index
    %271 = vector.load %arg5[%c0_117, %c2_118, %c0_119] : memref<2x8x128xf32, #tpu.memory_space<vmem>>, vector<2x1x128xf32>
    %272 = vector.shape_cast %271 : vector<2x1x128xf32> to vector<2x128xf32>
    %273 = vector.shape_cast %269 : vector<2x128xf32> to vector<2x1x128xf32>
    tpu.vector_store %arg5[%c0_117, %c2_118, %c0_119], %273 {strides = array<i32>} : memref<2x8x128xf32, #tpu.memory_space<vmem>>, vector<2x1x128xf32>,
    %c0_120 = arith.constant 0 : index
    %c0_121 = arith.constant 0 : index
    %274 = vector.load %arg6[%c0_120, %c0_121] : memref<4x128xf32, #tpu.memory_space<vmem>>, vector<4x128xf32>
    %275 = arith.truncf %274 : vector<4x128xf32> to vector<4x128xbf16>
    %cst_122 = arith.constant dense<0.000000e+00> : vector<4x256xf32>
    %276 = tpu.matmul %275, %3, %cst_122 {dimension_numbers = #tpu.dot_dimension_numbers<[1], [0], [0], [1], [0, 0, 1, 1], [], []>} : vector<4x128xbf16>, vector<128x256xbf16>, vector<4x256xf32> -> vector<4x256xf32>
    %277 = vector.extract_strided_slice %276 {offsets = [0, 0], sizes = [2, 256], strides = [1, 1]} : vector<4x256xf32> to vector<2x256xf32>
    %c0_123 = arith.constant 0 : index
    %c6_124 = arith.constant 6 : index
    %c0_125 = arith.constant 0 : index
    %278 = vector.load %arg1[%c0_123, %c6_124, %c0_125] : memref<2x8x256xbf16, #tpu.memory_space<vmem>>, vector<2x1x256xbf16>
    %279 = vector.shape_cast %278 : vector<2x1x256xbf16> to vector<2x256xbf16>
    %280 = arith.extf %279 : vector<2x256xbf16> to vector<2x256xf32>
    %281 = arith.addf %277, %280 : vector<2x256xf32>
    %282 = vector.extract_strided_slice %281 {offsets = [0, 0], sizes = [2, 128], strides = [1, 1]} : vector<2x256xf32> to vector<2x128xf32>
    %283 = arith.negf %282 : vector<2x128xf32>
    %284 = math.exp %283 : vector<2x128xf32>
    %cst_126 = arith.constant 1.000000e+00 : f32
    %285 = vector.broadcast %cst_126 : f32 to vector<2x128xf32>
    %286 = arith.addf %285, %284 : vector<2x128xf32>
    %287 = arith.divf %285, %286 : vector<2x128xf32>
    %288 = vector.extract_strided_slice %281 {offsets = [0, 128], sizes = [2, 128], strides = [1, 1]} : vector<2x256xf32> to vector<2x128xf32>
    %289 = math.tanh %288 : vector<2x128xf32>
    %290 = vector.extract_strided_slice %274 {offsets = [0, 0], sizes = [2, 128], strides = [1, 1]} : vector<4x128xf32> to vector<2x128xf32>
    %291 = arith.subf %289, %290 : vector<2x128xf32>
    %292 = arith.mulf %287, %291 : vector<2x128xf32>
    %293 = arith.addf %290, %292 : vector<2x128xf32>
    %c0_127 = arith.constant 0 : index
    %c0_128 = arith.constant 0 : index
    %294 = vector.load %arg6[%c0_127, %c0_128] : memref<4x128xf32, #tpu.memory_space<vmem>>, vector<2x128xf32>
    tpu.vector_store %arg6[%c0_127, %c0_128], %293 {strides = array<i32>} : memref<4x128xf32, #tpu.memory_space<vmem>>, vector<2x128xf32>,
    %c0_129 = arith.constant 0 : index
    %c6_130 = arith.constant 6 : index
    %c0_131 = arith.constant 0 : index
    %295 = vector.load %arg4[%c0_129, %c6_130, %c0_131] : memref<2x8x128xf32, #tpu.memory_space<vmem>>, vector<2x1x128xf32>
    %296 = vector.shape_cast %295 : vector<2x1x128xf32> to vector<2x128xf32>
    %297 = vector.shape_cast %293 : vector<2x128xf32> to vector<2x1x128xf32>
    tpu.vector_store %arg4[%c0_129, %c6_130, %c0_131], %297 {strides = array<i32>} : memref<2x8x128xf32, #tpu.memory_space<vmem>>, vector<2x1x128xf32>,
    %298 = vector.extract_strided_slice %276 {offsets = [2, 0], sizes = [2, 256], strides = [1, 1]} : vector<4x256xf32> to vector<2x256xf32>
    %c0_132 = arith.constant 0 : index
    %c1_133 = arith.constant 1 : index
    %c0_134 = arith.constant 0 : index
    %299 = vector.load %arg2[%c0_132, %c1_133, %c0_134] : memref<2x8x256xbf16, #tpu.memory_space<vmem>>, vector<2x1x256xbf16>
    %300 = vector.shape_cast %299 : vector<2x1x256xbf16> to vector<2x256xbf16>
    %301 = arith.extf %300 : vector<2x256xbf16> to vector<2x256xf32>
    %302 = arith.addf %298, %301 : vector<2x256xf32>
    %303 = vector.extract_strided_slice %302 {offsets = [0, 0], sizes = [2, 128], strides = [1, 1]} : vector<2x256xf32> to vector<2x128xf32>
    %304 = arith.negf %303 : vector<2x128xf32>
    %305 = math.exp %304 : vector<2x128xf32>
    %cst_135 = arith.constant 1.000000e+00 : f32
    %306 = vector.broadcast %cst_135 : f32 to vector<2x128xf32>
    %307 = arith.addf %306, %305 : vector<2x128xf32>
    %308 = arith.divf %306, %307 : vector<2x128xf32>
    %309 = vector.extract_strided_slice %302 {offsets = [0, 128], sizes = [2, 128], strides = [1, 1]} : vector<2x256xf32> to vector<2x128xf32>
    %310 = math.tanh %309 : vector<2x128xf32>
    %311 = vector.extract_strided_slice %274 {offsets = [2, 0], sizes = [2, 128], strides = [1, 1]} : vector<4x128xf32> to vector<2x128xf32>
    %312 = arith.subf %310, %311 : vector<2x128xf32>
    %313 = arith.mulf %308, %312 : vector<2x128xf32>
    %314 = arith.addf %311, %313 : vector<2x128xf32>
    %c2_136 = arith.constant 2 : index
    %c0_137 = arith.constant 0 : index
    %315 = vector.load %arg6[%c2_136, %c0_137] : memref<4x128xf32, #tpu.memory_space<vmem>>, vector<2x128xf32>
    tpu.vector_store %arg6[%c2_136, %c0_137], %314 {strides = array<i32>} : memref<4x128xf32, #tpu.memory_space<vmem>>, vector<2x128xf32>,
    %c0_138 = arith.constant 0 : index
    %c1_139 = arith.constant 1 : index
    %c0_140 = arith.constant 0 : index
    %316 = vector.load %arg5[%c0_138, %c1_139, %c0_140] : memref<2x8x128xf32, #tpu.memory_space<vmem>>, vector<2x1x128xf32>
    %317 = vector.shape_cast %316 : vector<2x1x128xf32> to vector<2x128xf32>
    %318 = vector.shape_cast %314 : vector<2x128xf32> to vector<2x1x128xf32>
    tpu.vector_store %arg5[%c0_138, %c1_139, %c0_140], %318 {strides = array<i32>} : memref<2x8x128xf32, #tpu.memory_space<vmem>>, vector<2x1x128xf32>,
    %c0_141 = arith.constant 0 : index
    %c0_142 = arith.constant 0 : index
    %319 = vector.load %arg6[%c0_141, %c0_142] : memref<4x128xf32, #tpu.memory_space<vmem>>, vector<4x128xf32>
    %320 = arith.truncf %319 : vector<4x128xf32> to vector<4x128xbf16>
    %cst_143 = arith.constant dense<0.000000e+00> : vector<4x256xf32>
    %321 = tpu.matmul %320, %3, %cst_143 {dimension_numbers = #tpu.dot_dimension_numbers<[1], [0], [0], [1], [0, 0, 1, 1], [], []>} : vector<4x128xbf16>, vector<128x256xbf16>, vector<4x256xf32> -> vector<4x256xf32>
    %322 = vector.extract_strided_slice %321 {offsets = [0, 0], sizes = [2, 256], strides = [1, 1]} : vector<4x256xf32> to vector<2x256xf32>
    %c0_144 = arith.constant 0 : index
    %c7_145 = arith.constant 7 : index
    %c0_146 = arith.constant 0 : index
    %323 = vector.load %arg1[%c0_144, %c7_145, %c0_146] : memref<2x8x256xbf16, #tpu.memory_space<vmem>>, vector<2x1x256xbf16>
    %324 = vector.shape_cast %323 : vector<2x1x256xbf16> to vector<2x256xbf16>
    %325 = arith.extf %324 : vector<2x256xbf16> to vector<2x256xf32>
    %326 = arith.addf %322, %325 : vector<2x256xf32>
    %327 = vector.extract_strided_slice %326 {offsets = [0, 0], sizes = [2, 128], strides = [1, 1]} : vector<2x256xf32> to vector<2x128xf32>
    %328 = arith.negf %327 : vector<2x128xf32>
    %329 = math.exp %328 : vector<2x128xf32>
    %cst_147 = arith.constant 1.000000e+00 : f32
    %330 = vector.broadcast %cst_147 : f32 to vector<2x128xf32>
    %331 = arith.addf %330, %329 : vector<2x128xf32>
    %332 = arith.divf %330, %331 : vector<2x128xf32>
    %333 = vector.extract_strided_slice %326 {offsets = [0, 128], sizes = [2, 128], strides = [1, 1]} : vector<2x256xf32> to vector<2x128xf32>
    %334 = math.tanh %333 : vector<2x128xf32>
    %335 = vector.extract_strided_slice %319 {offsets = [0, 0], sizes = [2, 128], strides = [1, 1]} : vector<4x128xf32> to vector<2x128xf32>
    %336 = arith.subf %334, %335 : vector<2x128xf32>
    %337 = arith.mulf %332, %336 : vector<2x128xf32>
    %338 = arith.addf %335, %337 : vector<2x128xf32>
    %c0_148 = arith.constant 0 : index
    %c0_149 = arith.constant 0 : index
    %339 = vector.load %arg6[%c0_148, %c0_149] : memref<4x128xf32, #tpu.memory_space<vmem>>, vector<2x128xf32>
    tpu.vector_store %arg6[%c0_148, %c0_149], %338 {strides = array<i32>} : memref<4x128xf32, #tpu.memory_space<vmem>>, vector<2x128xf32>,
    %c0_150 = arith.constant 0 : index
    %c7_151 = arith.constant 7 : index
    %c0_152 = arith.constant 0 : index
    %340 = vector.load %arg4[%c0_150, %c7_151, %c0_152] : memref<2x8x128xf32, #tpu.memory_space<vmem>>, vector<2x1x128xf32>
    %341 = vector.shape_cast %340 : vector<2x1x128xf32> to vector<2x128xf32>
    %342 = vector.shape_cast %338 : vector<2x128xf32> to vector<2x1x128xf32>
    tpu.vector_store %arg4[%c0_150, %c7_151, %c0_152], %342 {strides = array<i32>} : memref<2x8x128xf32, #tpu.memory_space<vmem>>, vector<2x1x128xf32>,
    %343 = vector.extract_strided_slice %321 {offsets = [2, 0], sizes = [2, 256], strides = [1, 1]} : vector<4x256xf32> to vector<2x256xf32>
    %c0_153 = arith.constant 0 : index
    %c0_154 = arith.constant 0 : index
    %c0_155 = arith.constant 0 : index
    %344 = vector.load %arg2[%c0_153, %c0_154, %c0_155] : memref<2x8x256xbf16, #tpu.memory_space<vmem>>, vector<2x1x256xbf16>
    %345 = vector.shape_cast %344 : vector<2x1x256xbf16> to vector<2x256xbf16>
    %346 = arith.extf %345 : vector<2x256xbf16> to vector<2x256xf32>
    %347 = arith.addf %343, %346 : vector<2x256xf32>
    %348 = vector.extract_strided_slice %347 {offsets = [0, 0], sizes = [2, 128], strides = [1, 1]} : vector<2x256xf32> to vector<2x128xf32>
    %349 = arith.negf %348 : vector<2x128xf32>
    %350 = math.exp %349 : vector<2x128xf32>
    %cst_156 = arith.constant 1.000000e+00 : f32
    %351 = vector.broadcast %cst_156 : f32 to vector<2x128xf32>
    %352 = arith.addf %351, %350 : vector<2x128xf32>
    %353 = arith.divf %351, %352 : vector<2x128xf32>
    %354 = vector.extract_strided_slice %347 {offsets = [0, 128], sizes = [2, 128], strides = [1, 1]} : vector<2x256xf32> to vector<2x128xf32>
    %355 = math.tanh %354 : vector<2x128xf32>
    %356 = vector.extract_strided_slice %319 {offsets = [2, 0], sizes = [2, 128], strides = [1, 1]} : vector<4x128xf32> to vector<2x128xf32>
    %357 = arith.subf %355, %356 : vector<2x128xf32>
    %358 = arith.mulf %353, %357 : vector<2x128xf32>
    %359 = arith.addf %356, %358 : vector<2x128xf32>
    %c2_157 = arith.constant 2 : index
    %c0_158 = arith.constant 0 : index
    %360 = vector.load %arg6[%c2_157, %c0_158] : memref<4x128xf32, #tpu.memory_space<vmem>>, vector<2x128xf32>
    tpu.vector_store %arg6[%c2_157, %c0_158], %359 {strides = array<i32>} : memref<4x128xf32, #tpu.memory_space<vmem>>, vector<2x128xf32>,
    %c0_159 = arith.constant 0 : index
    %c0_160 = arith.constant 0 : index
    %c0_161 = arith.constant 0 : index
    %361 = vector.load %arg5[%c0_159, %c0_160, %c0_161] : memref<2x8x128xf32, #tpu.memory_space<vmem>>, vector<2x1x128xf32>
    %362 = vector.shape_cast %361 : vector<2x1x128xf32> to vector<2x128xf32>
    %363 = vector.shape_cast %359 : vector<2x128xf32> to vector<2x1x128xf32>
    tpu.vector_store %arg5[%c0_159, %c0_160, %c0_161], %363 {strides = array<i32>} : memref<2x8x128xf32, #tpu.memory_space<vmem>>, vector<2x1x128xf32>,
    return
  }
  func.func @transform_0(%arg0: i32) -> (i32, i32, i32) {
    %c0_i32 = arith.constant 0 : i32
    %c0_i32_0 = arith.constant 0 : i32
    %c0_i32_1 = arith.constant 0 : i32
    return %c0_i32, %arg0, %c0_i32_0 : i32, i32, i32
  }
  func.func @transform_1(%arg0: i32) -> (i32, i32, i32) {
    %c0_i32 = arith.constant 0 : i32
    %0 = arith.subi %c0_i32, %arg0 : i32
    %c0_i32_0 = arith.constant 0 : i32
    %c0_i32_1 = arith.constant 0 : i32
    %c0_i32_2 = arith.constant 0 : i32
    return %c0_i32_0, %0, %c0_i32_1 : i32, i32, i32
  }
  func.func @transform_2(%arg0: i32) -> (i32, i32) {
    %c0_i32 = arith.constant 0 : i32
    %c0_i32_0 = arith.constant 0 : i32
    %c0_i32_1 = arith.constant 0 : i32
    return %c0_i32, %c0_i32_0 : i32, i32
  }
  func.func @transform_3(%arg0: i32) -> (i32, i32, i32) {
    %c0_i32 = arith.constant 0 : i32
    %c0_i32_0 = arith.constant 0 : i32
    %c0_i32_1 = arith.constant 0 : i32
    return %c0_i32, %arg0, %c0_i32_0 : i32, i32, i32
  }
  func.func @transform_4(%arg0: i32) -> (i32, i32, i32) {
    %c0_i32 = arith.constant 0 : i32
    %0 = arith.subi %c0_i32, %arg0 : i32
    %c0_i32_0 = arith.constant 0 : i32
    %c0_i32_1 = arith.constant 0 : i32
    %c0_i32_2 = arith.constant 0 : i32
    return %c0_i32_0, %0, %c0_i32_1 : i32, i32, i32
  }
}

</mosaic_0001>

<llo_original>
// kernel: tpu_custom_call.1
$region0: #{tpu_custom_call.1}
  #allocation0 [shape = 'u32[]', space=smem, size = 0x4, offset = 0x4, fixed_abs, tag = 'smem constant byte address 0x4 - core index']
  #allocation1 [shape = 'u32[144,128]{1,0:T(1,128)}', space=vmem, size = 0x12000, scoped, tag = 'internal scratch']
  #allocation2 [shape = 'f32[4,128]{1,0:T(4,128)}', space=vmem, size = 0x800, scoped, tag = 'scratch operand']
  %s0 = inlined_call_operand.hbm [shape: bf16[2,8,256], index: 0, kind: input, shape index: {}]
  %s1 = inlined_call_operand.hbm [shape: bf16[2,8,256], index: 1, kind: input, shape index: {}]
  %s2 = inlined_call_operand.hbm [shape: bf16[128,256], index: 2, kind: input, shape index: {}]
  %s3 = inlined_call_operand.hbm [shape: f32[2,8,128], index: 3, kind: output, shape index: {0}]
  %s4 = inlined_call_operand.hbm [shape: f32[2,8,128], index: 4, kind: output, shape index: {1}]
  %5 = xla_tuple %s3, %s4
  %s6 = sld [smem:[#allocation0]]
  $region46: #{tpu_custom_call.1} parent=0
    _
  %s8 = ssub.s32 1, %s6
  %s9 = scalar_select 0, %s8, %s6
  $region1: #{tpu_custom_call.1} parent=0
    #allocation3 [shape = 'u8[8192]{0}', space=vmem, size = 0x2000, scoped, tag = 'input window, operand 0, single buffered']
    #allocation4 [shape = 's32[1]{0}', space=sflag, size = 0x4, scoped, tag = 'scoped memory for tpu_custom_call.1']
    #allocation5 [shape = 's32[1]{0}', space=sflag, size = 0x4, scoped, tag = 'scoped memory for tpu_custom_call.1']
    #allocation6 [shape = 'u8[8192]{0}', space=vmem, size = 0x2000, scoped, tag = 'input window, operand 1, single buffered']
    #allocation7 [shape = 's32[1]{0}', space=sflag, size = 0x4, scoped, tag = 'scoped memory for tpu_custom_call.1']
    #allocation8 [shape = 'u8[65536]{0}', space=vmem, size = 0x10000, scoped, tag = 'input window, operand 2, single buffered']
    #allocation9 [shape = 'u8[8192]{0}', space=vmem, size = 0x2000, scoped, tag = 'output window, operand 0, single buffered']
    #allocation10 [shape = 'u8[8192]{0}', space=vmem, size = 0x2000, scoped, tag = 'output window, operand 1, single buffered']
    #allocation11 [shape = 's32[1]{0}', space=sflag, size = 0x4, scoped, tag = 'scoped memory for tpu_custom_call.1']
    %10 = vsyncpa [#allocation4], 0
    %11 = vsyncpa [#allocation7], 0
    %12 = vsyncpa [#allocation5], 0
    %13 = vsyncpa [#allocation11], 0
    // Predicated region
    $region2: #{tpu_custom_call.1} parent=1 // pred_check
      _
    $region3: #{tpu_custom_call.1} parent=1 // pred_check_branch
      %15 = sbr.rel (0) target = $region5
    $region4: #{tpu_custom_call.1} parent=1 // pred_region
      %s17 = ssub.s32 256, 256
      %18 = vsyncadd [#allocation4], %s17
      %s19 = sshll.u32 [#allocation3], 4
      %s20 = int_to_ptr.vmem [resolvable:$true] %s19
      %25 = dma.hbm_to_vmem [thread:$0]  %s0, 256, %s20, [#allocation4], 128, 128, 8
    $region5: #{tpu_custom_call.1} parent=1 // pred_fallthru
      _
    // Predicated region
    $region6: #{tpu_custom_call.1} parent=1 // pred_check
      _
    $region7: #{tpu_custom_call.1} parent=1 // pred_check_branch
      %27 = sbr.rel (0) target = $region9
    $region8: #{tpu_custom_call.1} parent=1 // pred_region
      %s28 = ssub.s32 0, 0
      %s30 = ssub.s32 256, 256
      %31 = vsyncadd [#allocation7], %s30
      %s32 = smul.addr %s28, 2
      %s33 = smul.addr %s32, 64
      %s34 = scalar_lea.hbm %s1, %s33
      %s35 = sshll.u32 [#allocation6], 4
      %s36 = int_to_ptr.vmem [resolvable:$true] %s35
      %41 = dma.hbm_to_vmem [thread:$0]  %s34, 256, %s36, [#allocation7], 128, 128, 8
    $region9: #{tpu_custom_call.1} parent=1 // pred_fallthru
      _
    // Predicated region
    $region10: #{tpu_custom_call.1} parent=1 // pred_check
      _
    $region11: #{tpu_custom_call.1} parent=1 // pred_check_branch
      %43 = sbr.rel (0) target = $region13
    $region12: #{tpu_custom_call.1} parent=1 // pred_region
      %s45 = ssub.s32 2048, 2048
      %46 = vsyncadd [#allocation7], %s45
      %s47 = sshll.u32 [#allocation8], 4
      %s48 = int_to_ptr.vmem [resolvable:$true] %s47
      %53 = dma.hbm_to_vmem [thread:$0]  %s2, 2048, %s48, [#allocation7], 128, 128, 8
    $region13: #{tpu_custom_call.1} parent=1 // pred_fallthru
      _
    // Predicated region
    $region14: #{tpu_custom_call.1} parent=1 // pred_check
      _
    $region15: #{tpu_custom_call.1} parent=1 // pred_check_branch
      %55 = sbr.rel (0) target = $region17
    $region16: #{tpu_custom_call.1} parent=1 // pred_region
      %56 = dma.done [#allocation4], 256
    $region17: #{tpu_custom_call.1} parent=1 // pred_fallthru
      _
    // Predicated region
    $region18: #{tpu_custom_call.1} parent=1 // pred_check
      _
    $region19: #{tpu_custom_call.1} parent=1 // pred_check_branch
      %58 = sbr.rel (0) target = $region21
    $region20: #{tpu_custom_call.1} parent=1 // pred_region
      %59 = dma.done [#allocation7], 256
    $region21: #{tpu_custom_call.1} parent=1 // pred_fallthru
      _
    // Predicated region
    $region22: #{tpu_custom_call.1} parent=1 // pred_check
      _
    $region23: #{tpu_custom_call.1} parent=1 // pred_check_branch
      %61 = sbr.rel (0) target = $region25
    $region24: #{tpu_custom_call.1} parent=1 // pred_region
      %62 = dma.done [#allocation7], 2048
    $region25: #{tpu_custom_call.1} parent=1 // pred_fallthru
      _
    %s63 = ssub.s32 0, 0
    %s64 = ssub.s32 0, 0
    %p66 = scmp.eq.s32.totalorder 0, 0
    // Predicated region
    $region26: #{tpu_custom_call.1} parent=1 // pred_check
      %p67 = pneg %p66
    $region27: #{tpu_custom_call.1} parent=1 // pred_check_branch
      %69 = sbr.rel (%p67) target = $region29
    $region28: #{tpu_custom_call.1} parent=1 // pred_region
      %70 = vst [vmem:[#allocation2] sm:$0xf] 0.0
    $region29: #{tpu_custom_call.1} parent=1 // pred_fallthru
      _
    %v71 = vld [vmem:[#allocation8] sm:$0xff]
    %v72 = vld [vmem:[#allocation8 + $0x8] sm:$0xff]
    %v73 = vld [vmem:[#allocation8 + $0x10] sm:$0xff]
    %v74 = vld [vmem:[#allocation8 + $0x18] sm:$0xff]
    %v75 = vld [vmem:[#allocation8 + $0x20] sm:$0xff]
    %v76 = vld [vmem:[#allocation8 + $0x28] sm:$0xff]
    %v77 = vld [vmem:[#allocation8 + $0x30] sm:$0xff]
    %v78 = vld [vmem:[#allocation8 + $0x38] sm:$0xff]
    %v79 = vld [vmem:[#allocation8 + $0x40] sm:$0xff]
    %v80 = vld [vmem:[#allocation8 + $0x48] sm:$0xff]
    %v81 = vld [vmem:[#allocation8 + $0x50] sm:$0xff]
    %v82 = vld [vmem:[#allocation8 + $0x58] sm:$0xff]
    %v83 = vld [vmem:[#allocation8 + $0x60] sm:$0xff]
    %v84 = vld [vmem:[#allocation8 + $0x68] sm:$0xff]
    %v85 = vld [vmem:[#allocation8 + $0x70] sm:$0xff]
    %v86 = vld [vmem:[#allocation8 + $0x78] sm:$0xff]
    %v87 = vld [vmem:[#allocation2] sm:$0xf]
    %v88 = vpack.c.bf16 %v87, %v87
    %v105 = vunpack.c.l.b16 %v71
    %v106 = vunpack.c.h.b16 %v71
    %v107 = vunpack.c.l.b16 %v72
    %v108 = vunpack.c.h.b16 %v72
    %v109 = vunpack.c.l.b16 %v73
    %v110 = vunpack.c.h.b16 %v73
    %v111 = vunpack.c.l.b16 %v74
    %v112 = vunpack.c.h.b16 %v74
    %v113 = vunpack.c.l.b16 %v75
    %v114 = vunpack.c.h.b16 %v75
    %v115 = vunpack.c.l.b16 %v76
    %v116 = vunpack.c.h.b16 %v76
    %v117 = vunpack.c.l.b16 %v77
    %v118 = vunpack.c.h.b16 %v77
    %v119 = vunpack.c.l.b16 %v78
    %v120 = vunpack.c.h.b16 %v78
    %v121 = vunpack.c.l.b16 %v79
    %v122 = vunpack.c.h.b16 %v79
    %v123 = vunpack.c.l.b16 %v80
    %v124 = vunpack.c.h.b16 %v80
    %v125 = vunpack.c.l.b16 %v81
    %v126 = vunpack.c.h.b16 %v81
    %v127 = vunpack.c.l.b16 %v82
    %v128 = vunpack.c.h.b16 %v82
    %v129 = vunpack.c.l.b16 %v83
    %v130 = vunpack.c.h.b16 %v83
    %v131 = vunpack.c.l.b16 %v84
    %v132 = vunpack.c.h.b16 %v84
    %v133 = vunpack.c.l.b16 %v85
    %v134 = vunpack.c.h.b16 %v85
    %v135 = vunpack.c.l.b16 %v86
    %v136 = vunpack.c.h.b16 %v86
    %v137 = vpack.c.b16 %v107, %v105
    %v138 = vpack.c.b16 %v108, %v106
    %v139 = vpack.c.b16 %v111, %v109
    %v140 = vpack.c.b16 %v112, %v110
    %v141 = vpack.c.b16 %v115, %v113
    %v142 = vpack.c.b16 %v116, %v114
    %v143 = vpack.c.b16 %v119, %v117
    %v144 = vpack.c.b16 %v120, %v118
    %v145 = vpack.c.b16 %v123, %v121
    %v146 = vpack.c.b16 %v124, %v122
    %v147 = vpack.c.b16 %v127, %v125
    %v148 = vpack.c.b16 %v128, %v126
    %v149 = vpack.c.b16 %v131, %v129
    %v150 = vpack.c.b16 %v132, %v130
    %v151 = vpack.c.b16 %v135, %v133
    %v152 = vpack.c.b16 %v136, %v134
    %169 = vmatprep.subr.bf16.mxu0 %v152
    %170 = vmatpush1.bf16.msra.mxu0 %v151
    %171 = vmatprep.subr.bf16.mxu0 %v150
    %172 = vmatpush1.bf16.msra.mxu0 %v149
    %173 = vmatprep.subr.bf16.mxu0 %v148
    %174 = vmatpush1.bf16.msra.mxu0 %v147
    %175 = vmatprep.subr.bf16.mxu0 %v146
    %176 = vmatpush1.bf16.msra.mxu0 %v145
    %177 = vmatprep.subr.bf16.mxu0 %v144
    %178 = vmatpush1.bf16.msra.mxu0 %v143
    %179 = vmatprep.subr.bf16.mxu0 %v142
    %180 = vmatpush1.bf16.msra.mxu0 %v141
    %181 = vmatprep.subr.bf16.mxu0 %v140
    %182 = vmatpush1.bf16.msra.mxu0 %v139
    %183 = vmatprep.subr.bf16.mxu0 %v138
    %184 = vmatpush1.bf16.msra.mxu0 %v137
    %185 = vmatprep.subr.bf16.mxu0 0
    %186 = vmatpush2.bf16.msra.mxu0 0
    %187 = vmatprep.subr.bf16.mxu0 0
    %188 = vmatpush2.bf16.msra.mxu0 0
    %189 = vmatprep.subr.bf16.mxu0 0
    %190 = vmatpush2.bf16.msra.mxu0 0
    %191 = vmatprep.subr.bf16.mxu0 0
    %192 = vmatpush2.bf16.msra.mxu0 0
    %193 = vmatprep.subr.bf16.mxu0 0
    %194 = vmatpush2.bf16.msra.mxu0 0
    %195 = vmatprep.subr.bf16.mxu0 0
    %196 = vmatpush2.bf16.msra.mxu0 0
    %197 = vmatprep.subr.bf16.mxu0 0
    %198 = vmatpush2.bf16.msra.mxu0 0
    %199 = vmatprep.subr.bf16.mxu0 0
    %200 = vmatpush2.bf16.msra.mxu0 0
    %201 = vmatprep.mubr.bf16.mxu0 0
    %202 = vmatmul.mubr.bf16.gmra.mxu0 %v88
    %v203 = vpop.f32.mrf.mxu0
    %v204 = vadd.f32 0.0, %v203
    %v205 = vpop.f32.mrf.mxu0
    %v206 = vadd.f32 0.0, %v205
    %v207 = vpop.f32.mrf.mxu0
    %v208 = vpop.f32.mrf.mxu0
    %209 = vdwg.mxu0
    %v210 = vld [vmem:[#allocation3] sm:$0x11]
    %v211 = vld [vmem:[#allocation3 + $0x8] sm:$0x11]
    %v212 = vunpack.c.l.bf16 %v210
    %v213 = vunpack.c.h.bf16 %v210
    %v214 = vunpack.c.l.bf16 %v211
    %v215 = vunpack.c.h.bf16 %v211
    %v220 = vrot.slane %v214, 7
    %vm221 = vcmask 1041409
    %v222 = vsel %vm221, %v220, %v212
    %v223 = vrot.slane %v215, 7
    %v224 = vsel %vm221, %v223, %v213
    %v227 = vadd.f32 %v204, %v222
    %v228 = vadd.f32 %v206, %v224
    %v229 = vxor.u32 %v227, 2147483648
    %v230 = vmul.f32 %v229, 1.442695
    %v231 = vpow.pop %v230
    %v232 = vadd.f32 %v231, 1.0
    %v233 = vrcp.pop %v232
    %v234 = vmul.f32 1.0, %v233
    %v235 = vtanh.pop %v228
    %v236 = vsub.f32 %v235, %v87
    %v237 = vmul.f32 %v234, %v236
    %v238 = vadd.f32 %v87, %v237
    %239 = vst [vmem:[#allocation2] sm:$0x3] %v238
    %v242 = vunpack.c.l.s4 1966171168
    %v243 = vunpack.c.0.s8 %v242
    %v244 = vlaneseq
    %v245 = vshrl.u32 %v244, 7
    %v246 = vsub.s32 %v243, %v245
    %v247 = vrot.slane %v238, %v246
    %v248 = vcombine.high %v247, %v247
    %v250 = vunpack.c.l.s4 1966171168
    %v251 = vunpack.c.0.s8 %v250
    %v252 = vlaneseq
    %v253 = vshrl.u32 %v252, 7
    %v254 = vsub.s32 %v251, %v253
    %v255 = vrot.slane %v247, %v254
    %v257 = vunpack.c.l.s4 1966171168
    %v258 = vunpack.c.0.s8 %v257
    %v259 = vlaneseq
    %v260 = vshrl.u32 %v259, 7
    %v261 = vsub.s32 %v258, %v260
    %v262 = vrot.slane %v248, %v261
    %265 = vst [vmem:[#allocation9] sm:$0x1] %v255
    %266 = vst [vmem:[#allocation9 + $0x8] sm:$0x1] %v262
    %v267 = vld [vmem:[#allocation6] sm:$0x88]
    %v268 = vld [vmem:[#allocation6 + $0x8] sm:$0x88]
    %v269 = vunpack.c.l.bf16 %v267
    %v270 = vunpack.c.h.bf16 %v267
    %v271 = vunpack.c.l.bf16 %v268
    %v272 = vunpack.c.h.bf16 %v268
    %v277 = vrot.slane %v269, 5
    %v278 = vrot.slane %v271, 4
    %vm279 = vcmask 1043459
    %v280 = vsel %vm279, %v278, %v277
    %v281 = vrot.slane %v270, 5
    %v282 = vrot.slane %v272, 4
    %v283 = vsel %vm279, %v282, %v281
    %v286 = vadd.f32 %v204, %v280
    %v287 = vadd.f32 %v206, %v283
    %v288 = vxor.u32 %v286, 2147483648
    %v289 = vmul.f32 %v288, 1.442695
    %v290 = vpow.pop %v289
    %v291 = vadd.f32 %v290, 1.0
    %v292 = vrcp.pop %v291
    %v293 = vmul.f32 1.0, %v292
    %v294 = vtanh.pop %v287
    %v295 = vsub.f32 %v294, %v87
    %v296 = vmul.f32 %v293, %v295
    %v297 = vadd.f32 %v87, %v296
    %298 = vst [vmem:[#allocation2] sm:$0xc] %v297
    %v301 = vunpack.c.l.s4 1966171168
    %v302 = vunpack.c.0.s8 %v301
    %v303 = vlaneseq
    %v304 = vshrl.u32 %v303, 7
    %v305 = vsub.s32 %v302, %v304
    %v306 = vrot.slane %v297, %v305
    %v307 = vcombine.high %v306, %v306
    %v309 = vunpack.c.l.s4 1966171168
    %v310 = vunpack.c.0.s8 %v309
    %v311 = vlaneseq
    %v312 = vshrl.u32 %v311, 7
    %v313 = vsub.s32 %v310, %v312
    %v314 = vrot.slane %v306, %v313
    %v316 = vunpack.c.l.s4 1966171168
    %v317 = vunpack.c.0.s8 %v316
    %v318 = vlaneseq
    %v319 = vshrl.u32 %v318, 7
    %v320 = vsub.s32 %v317, %v319
    %v321 = vrot.slane %v307, %v320
    %v322 = vcombine.high %v314, %v314
    %v323 = vcombine.high %v321, %v321
    %326 = vst [vmem:[#allocation10 + $0x7] sm:$0x1] %v322
    %327 = vst [vmem:[#allocation10 + $0xf] sm:$0x1] %v323
    %v328 = vld [vmem:[#allocation2] sm:$0xf]
    %v329 = vpack.c.bf16 %v328, %v328
    %330 = vmatprep.subr.bf16.mxu0 %v152
    %331 = vmatpush1.bf16.msra.mxu0 %v151
    %332 = vmatprep.subr.bf16.mxu0 %v150
    %333 = vmatpush1.bf16.msra.mxu0 %v149
    %334 = vmatprep.subr.bf16.mxu0 %v148
    %335 = vmatpush1.bf16.msra.mxu0 %v147
    %336 = vmatprep.subr.bf16.mxu0 %v146
    %337 = vmatpush1.bf16.msra.mxu0 %v145
    %338 = vmatprep.subr.bf16.mxu0 %v144
    %339 = vmatpush1.bf16.msra.mxu0 %v143
    %340 = vmatprep.subr.bf16.mxu0 %v142
    %341 = vmatpush1.bf16.msra.mxu0 %v141
    %342 = vmatprep.subr.bf16.mxu0 %v140
    %343 = vmatpush1.bf16.msra.mxu0 %v139
    %344 = vmatprep.subr.bf16.mxu0 %v138
    %345 = vmatpush1.bf16.msra.mxu0 %v137
    %346 = vmatprep.subr.bf16.mxu0 0
    %347 = vmatpush2.bf16.msra.mxu0 0
    %348 = vmatprep.subr.bf16.mxu0 0
    %349 = vmatpush2.bf16.msra.mxu0 0
    %350 = vmatprep.subr.bf16.mxu0 0
    %351 = vmatpush2.bf16.msra.mxu0 0
    %352 = vmatprep.subr.bf16.mxu0 0
    %353 = vmatpush2.bf16.msra.mxu0 0
    %354 = vmatprep.subr.bf16.mxu0 0
    %355 = vmatpush2.bf16.msra.mxu0 0
    %356 = vmatprep.subr.bf16.mxu0 0
    %357 = vmatpush2.bf16.msra.mxu0 0
    %358 = vmatprep.subr.bf16.mxu0 0
    %359 = vmatpush2.bf16.msra.mxu0 0
    %360 = vmatprep.subr.bf16.mxu0 0
    %361 = vmatpush2.bf16.msra.mxu0 0
    %362 = vmatprep.mubr.bf16.mxu0 0
    %363 = vmatmul.mubr.bf16.gmra.mxu0 %v329
    %v364 = vpop.f32.mrf.mxu0
    %v365 = vadd.f32 0.0, %v364
    %v366 = vpop.f32.mrf.mxu0
    %v367 = vadd.f32 0.0, %v366
    %v368 = vpop.f32.mrf.mxu0
    %v369 = vpop.f32.mrf.mxu0
    %370 = vdwg.mxu0
    %v371 = vld [vmem:[#allocation3] sm:$0x11]
    %v372 = vld [vmem:[#allocation3 + $0x8] sm:$0x11]
    %v373 = vunpack.c.l.bf16 %v371
    %v374 = vunpack.c.h.bf16 %v371
    %v375 = vunpack.c.l.bf16 %v372
    %v376 = vunpack.c.h.bf16 %v372
    %v381 = vrot.slane %v373, 1
    %v382 = vsel %vm221, %v375, %v381
    %v383 = vrot.slane %v374, 1
    %v384 = vsel %vm221, %v376, %v383
    %v387 = vadd.f32 %v365, %v382
    %v388 = vadd.f32 %v367, %v384
    %v389 = vxor.u32 %v387, 2147483648
    %v390 = vmul.f32 %v389, 1.442695
    %v391 = vpow.pop %v390
    %v392 = vadd.f32 %v391, 1.0
    %v393 = vrcp.pop %v392
    %v394 = vmul.f32 1.0, %v393
    %v395 = vtanh.pop %v388
    %v396 = vsub.f32 %v395, %v328
    %v397 = vmul.f32 %v394, %v396
    %v398 = vadd.f32 %v328, %v397
    %399 = vst [vmem:[#allocation2] sm:$0x3] %v398
    %v402 = vunpack.c.l.s4 1966171168
    %v403 = vunpack.c.0.s8 %v402
    %v404 = vlaneseq
    %v405 = vshrl.u32 %v404, 7
    %v406 = vsub.s32 %v403, %v405
    %v407 = vrot.slane %v398, %v406
    %v408 = vcombine.high %v407, %v407
    %v410 = vunpack.c.l.s4 1966171168
    %v411 = vunpack.c.0.s8 %v410
    %v412 = vlaneseq
    %v413 = vshrl.u32 %v412, 7
    %v414 = vsub.s32 %v411, %v413
    %v415 = vrot.slane %v407, %v414
    %v417 = vunpack.c.l.s4 1966171168
    %v418 = vunpack.c.0.s8 %v417
    %v419 = vlaneseq
    %v420 = vshrl.u32 %v419, 7
    %v421 = vsub.s32 %v418, %v420
    %v422 = vrot.slane %v408, %v421
    %425 = vst [vmem:[#allocation9 + $0x1] sm:$0x1] %v415
    %426 = vst [vmem:[#allocation9 + $0x9] sm:$0x1] %v422
    %v427 = vld [vmem:[#allocation6] sm:$0x88]
    %v428 = vld [vmem:[#allocation6 + $0x8] sm:$0x88]
    %v429 = vunpack.c.l.bf16 %v427
    %v430 = vunpack.c.h.bf16 %v427
    %v431 = vunpack.c.l.bf16 %v428
    %v432 = vunpack.c.h.bf16 %v428
    %v437 = vrot.slane %v429, 4
    %v438 = vrot.slane %v431, 3
    %v439 = vsel %vm279, %v438, %v437
    %v440 = vrot.slane %v430, 4
    %v441 = vrot.slane %v432, 3
    %v442 = vsel %vm279, %v441, %v440
    %v445 = vadd.f32 %v365, %v439
    %v446 = vadd.f32 %v367, %v442
    %v447 = vxor.u32 %v445, 2147483648
    %v448 = vmul.f32 %v447, 1.442695
    %v449 = vpow.pop %v448
    %v450 = vadd.f32 %v449, 1.0
    %v451 = vrcp.pop %v450
    %v452 = vmul.f32 1.0, %v451
    %v453 = vtanh.pop %v446
    %v454 = vsub.f32 %v453, %v328
    %v455 = vmul.f32 %v452, %v454
    %v456 = vadd.f32 %v328, %v455
    %457 = vst [vmem:[#allocation2] sm:$0xc] %v456
    %v460 = vunpack.c.l.s4 1966171168
    %v461 = vunpack.c.0.s8 %v460
    %v462 = vlaneseq
    %v463 = vshrl.u32 %v462, 7
    %v464 = vsub.s32 %v461, %v463
    %v465 = vrot.slane %v456, %v464
    %v466 = vcombine.high %v465, %v465
    %v468 = vunpack.c.l.s4 1966171168
    %v469 = vunpack.c.0.s8 %v468
    %v470 = vlaneseq
    %v471 = vshrl.u32 %v470, 7
    %v472 = vsub.s32 %v469, %v471
    %v473 = vrot.slane %v465, %v472
    %v475 = vunpack.c.l.s4 1966171168
    %v476 = vunpack.c.0.s8 %v475
    %v477 = vlaneseq
    %v478 = vshrl.u32 %v477, 7
    %v479 = vsub.s32 %v476, %v478
    %v480 = vrot.slane %v466, %v479
    %v481 = vcombine.high %v473, %v473
    %v482 = vcombine.high %v480, %v480
    %485 = vst [vmem:[#allocation10 + $0x6] sm:$0x1] %v481
    %486 = vst [vmem:[#allocation10 + $0xe] sm:$0x1] %v482
    %v487 = vld [vmem:[#allocation2] sm:$0xf]
    %v488 = vpack.c.bf16 %v487, %v487
    %489 = vmatprep.subr.bf16.mxu0 %v152
    %490 = vmatpush1.bf16.msra.mxu0 %v151
    %491 = vmatprep.subr.bf16.mxu0 %v150
    %492 = vmatpush1.bf16.msra.mxu0 %v149
    %493 = vmatprep.subr.bf16.mxu0 %v148
    %494 = vmatpush1.bf16.msra.mxu0 %v147
    %495 = vmatprep.subr.bf16.mxu0 %v146
    %496 = vmatpush1.bf16.msra.mxu0 %v145
    %497 = vmatprep.subr.bf16.mxu0 %v144
    %498 = vmatpush1.bf16.msra.mxu0 %v143
    %499 = vmatprep.subr.bf16.mxu0 %v142
    %500 = vmatpush1.bf16.msra.mxu0 %v141
    %501 = vmatprep.subr.bf16.mxu0 %v140
    %502 = vmatpush1.bf16.msra.mxu0 %v139
    %503 = vmatprep.subr.bf16.mxu0 %v138
    %504 = vmatpush1.bf16.msra.mxu0 %v137
    %505 = vmatprep.subr.bf16.mxu0 0
    %506 = vmatpush2.bf16.msra.mxu0 0
    %507 = vmatprep.subr.bf16.mxu0 0
    %508 = vmatpush2.bf16.msra.mxu0 0
    %509 = vmatprep.subr.bf16.mxu0 0
    %510 = vmatpush2.bf16.msra.mxu0 0
    %511 = vmatprep.subr.bf16.mxu0 0
    %512 = vmatpush2.bf16.msra.mxu0 0
    %513 = vmatprep.subr.bf16.mxu0 0
    %514 = vmatpush2.bf16.msra.mxu0 0
    %515 = vmatprep.subr.bf16.mxu0 0
    %516 = vmatpush2.bf16.msra.mxu0 0
    %517 = vmatprep.subr.bf16.mxu0 0
    %518 = vmatpush2.bf16.msra.mxu0 0
    %519 = vmatprep.subr.bf16.mxu0 0
    %520 = vmatpush2.bf16.msra.mxu0 0
    %521 = vmatprep.mubr.bf16.mxu0 0
    %522 = vmatmul.mubr.bf16.gmra.mxu0 %v488
    %v523 = vpop.f32.mrf.mxu0
    %v524 = vadd.f32 0.0, %v523
    %v525 = vpop.f32.mrf.mxu0
    %v526 = vadd.f32 0.0, %v525
    %v527 = vpop.f32.mrf.mxu0
    %v528 = vpop.f32.mrf.mxu0
    %529 = vdwg.mxu0
    %v530 = vld [vmem:[#allocation3] sm:$0x22]
    %v531 = vld [vmem:[#allocation3 + $0x8] sm:$0x22]
    %v532 = vunpack.c.l.bf16 %v530
    %v533 = vunpack.c.h.bf16 %v530
    %v534 = vunpack.c.l.bf16 %v531
    %v535 = vunpack.c.h.bf16 %v531
    %v540 = vrot.slane %v532, 2
    %v541 = vrot.slane %v534, 1
    %v542 = vsel %vm221, %v541, %v540
    %v543 = vrot.slane %v533, 2
    %v544 = vrot.slane %v535, 1
    %v545 = vsel %vm221, %v544, %v543
    %v548 = vadd.f32 %v524, %v542
    %v549 = vadd.f32 %v526, %v545
    %v550 = vxor.u32 %v548, 2147483648
    %v551 = vmul.f32 %v550, 1.442695
    %v552 = vpow.pop %v551
    %v553 = vadd.f32 %v552, 1.0
    %v554 = vrcp.pop %v553
    %v555 = vmul.f32 1.0, %v554
    %v556 = vtanh.pop %v549
    %v557 = vsub.f32 %v556, %v487
    %v558 = vmul.f32 %v555, %v557
    %v559 = vadd.f32 %v487, %v558
    %560 = vst [vmem:[#allocation2] sm:$0x3] %v559
    %v563 = vunpack.c.l.s4 1966171168
    %v564 = vunpack.c.0.s8 %v563
    %v565 = vlaneseq
    %v566 = vshrl.u32 %v565, 7
    %v567 = vsub.s32 %v564, %v566
    %v568 = vrot.slane %v559, %v567
    %v569 = vcombine.high %v568, %v568
    %v571 = vunpack.c.l.s4 1966171168
    %v572 = vunpack.c.0.s8 %v571
    %v573 = vlaneseq
    %v574 = vshrl.u32 %v573, 7
    %v575 = vsub.s32 %v572, %v574
    %v576 = vrot.slane %v568, %v575
    %v578 = vunpack.c.l.s4 1966171168
    %v579 = vunpack.c.0.s8 %v578
    %v580 = vlaneseq
    %v581 = vshrl.u32 %v580, 7
    %v582 = vsub.s32 %v579, %v581
    %v583 = vrot.slane %v569, %v582
    %586 = vst [vmem:[#allocation9 + $0x2] sm:$0x1] %v576
    %587 = vst [vmem:[#allocation9 + $0xa] sm:$0x1] %v583
    %v588 = vld [vmem:[#allocation6] sm:$0x44]
    %v589 = vld [vmem:[#allocation6 + $0x8] sm:$0x44]
    %v590 = vunpack.c.l.bf16 %v588
    %v591 = vunpack.c.h.bf16 %v588
    %v592 = vunpack.c.l.bf16 %v589
    %v593 = vunpack.c.h.bf16 %v589
    %v598 = vrot.slane %v590, 3
    %v599 = vrot.slane %v592, 2
    %v600 = vsel %vm279, %v599, %v598
    %v601 = vrot.slane %v591, 3
    %v602 = vrot.slane %v593, 2
    %v603 = vsel %vm279, %v602, %v601
    %v606 = vadd.f32 %v524, %v600
    %v607 = vadd.f32 %v526, %v603
    %v608 = vxor.u32 %v606, 2147483648
    %v609 = vmul.f32 %v608, 1.442695
    %v610 = vpow.pop %v609
    %v611 = vadd.f32 %v610, 1.0
    %v612 = vrcp.pop %v611
    %v613 = vmul.f32 1.0, %v612
    %v614 = vtanh.pop %v607
    %v615 = vsub.f32 %v614, %v487
    %v616 = vmul.f32 %v613, %v615
    %v617 = vadd.f32 %v487, %v616
    %618 = vst [vmem:[#allocation2] sm:$0xc] %v617
    %v621 = vunpack.c.l.s4 1966171168
    %v622 = vunpack.c.0.s8 %v621
    %v623 = vlaneseq
    %v624 = vshrl.u32 %v623, 7
    %v625 = vsub.s32 %v622, %v624
    %v626 = vrot.slane %v617, %v625
    %v627 = vcombine.high %v626, %v626
    %v629 = vunpack.c.l.s4 1966171168
    %v630 = vunpack.c.0.s8 %v629
    %v631 = vlaneseq
    %v632 = vshrl.u32 %v631, 7
    %v633 = vsub.s32 %v630, %v632
    %v634 = vrot.slane %v626, %v633
    %v636 = vunpack.c.l.s4 1966171168
    %v637 = vunpack.c.0.s8 %v636
    %v638 = vlaneseq
    %v639 = vshrl.u32 %v638, 7
    %v640 = vsub.s32 %v637, %v639
    %v641 = vrot.slane %v627, %v640
    %v642 = vcombine.high %v634, %v634
    %v643 = vcombine.high %v641, %v641
    %646 = vst [vmem:[#allocation10 + $0x5] sm:$0x1] %v642
    %647 = vst [vmem:[#allocation10 + $0xd] sm:$0x1] %v643
    %v648 = vld [vmem:[#allocation2] sm:$0xf]
    %v649 = vpack.c.bf16 %v648, %v648
    %650 = vmatprep.subr.bf16.mxu0 %v152
    %651 = vmatpush1.bf16.msra.mxu0 %v151
    %652 = vmatprep.subr.bf16.mxu0 %v150
    %653 = vmatpush1.bf16.msra.mxu0 %v149
    %654 = vmatprep.subr.bf16.mxu0 %v148
    %655 = vmatpush1.bf16.msra.mxu0 %v147
    %656 = vmatprep.subr.bf16.mxu0 %v146
    %657 = vmatpush1.bf16.msra.mxu0 %v145
    %658 = vmatprep.subr.bf16.mxu0 %v144
    %659 = vmatpush1.bf16.msra.mxu0 %v143
    %660 = vmatprep.subr.bf16.mxu0 %v142
    %661 = vmatpush1.bf16.msra.mxu0 %v141
    %662 = vmatprep.subr.bf16.mxu0 %v140
    %663 = vmatpush1.bf16.msra.mxu0 %v139
    %664 = vmatprep.subr.bf16.mxu0 %v138
    %665 = vmatpush1.bf16.msra.mxu0 %v137
    %666 = vmatprep.subr.bf16.mxu0 0
    %667 = vmatpush2.bf16.msra.mxu0 0
    %668 = vmatprep.subr.bf16.mxu0 0
    %669 = vmatpush2.bf16.msra.mxu0 0
    %670 = vmatprep.subr.bf16.mxu0 0
    %671 = vmatpush2.bf16.msra.mxu0 0
    %672 = vmatprep.subr.bf16.mxu0 0
    %673 = vmatpush2.bf16.msra.mxu0 0
    %674 = vmatprep.subr.bf16.mxu0 0
    %675 = vmatpush2.bf16.msra.mxu0 0
    %676 = vmatprep.subr.bf16.mxu0 0
    %677 = vmatpush2.bf16.msra.mxu0 0
    %678 = vmatprep.subr.bf16.mxu0 0
    %679 = vmatpush2.bf16.msra.mxu0 0
    %680 = vmatprep.subr.bf16.mxu0 0
    %681 = vmatpush2.bf16.msra.mxu0 0
    %682 = vmatprep.mubr.bf16.mxu0 0
    %683 = vmatmul.mubr.bf16.gmra.mxu0 %v649
    %v684 = vpop.f32.mrf.mxu0
    %v685 = vadd.f32 0.0, %v684
    %v686 = vpop.f32.mrf.mxu0
    %v687 = vadd.f32 0.0, %v686
    %v688 = vpop.f32.mrf.mxu0
    %v689 = vpop.f32.mrf.mxu0
    %690 = vdwg.mxu0
    %v691 = vld [vmem:[#allocation3] sm:$0x22]
    %v692 = vld [vmem:[#allocation3 + $0x8] sm:$0x22]
    %v693 = vunpack.c.l.bf16 %v691
    %v694 = vunpack.c.h.bf16 %v691
    %v695 = vunpack.c.l.bf16 %v692
    %v696 = vunpack.c.h.bf16 %v692
    %v701 = vrot.slane %v693, 3
    %v702 = vrot.slane %v695, 2
    %v703 = vsel %vm221, %v702, %v701
    %v704 = vrot.slane %v694, 3
    %v705 = vrot.slane %v696, 2
    %v706 = vsel %vm221, %v705, %v704
    %v709 = vadd.f32 %v685, %v703
    %v710 = vadd.f32 %v687, %v706
    %v711 = vxor.u32 %v709, 2147483648
    %v712 = vmul.f32 %v711, 1.442695
    %v713 = vpow.pop %v712
    %v714 = vadd.f32 %v713, 1.0
    %v715 = vrcp.pop %v714
    %v716 = vmul.f32 1.0, %v715
    %v717 = vtanh.pop %v710
    %v718 = vsub.f32 %v717, %v648
    %v719 = vmul.f32 %v716, %v718
    %v720 = vadd.f32 %v648, %v719
    %721 = vst [vmem:[#allocation2] sm:$0x3] %v720
    %v724 = vunpack.c.l.s4 1966171168
    %v725 = vunpack.c.0.s8 %v724
    %v726 = vlaneseq
    %v727 = vshrl.u32 %v726, 7
    %v728 = vsub.s32 %v725, %v727
    %v729 = vrot.slane %v720, %v728
    %v730 = vcombine.high %v729, %v729
    %v732 = vunpack.c.l.s4 1966171168
    %v733 = vunpack.c.0.s8 %v732
    %v734 = vlaneseq
    %v735 = vshrl.u32 %v734, 7
    %v736 = vsub.s32 %v733, %v735
    %v737 = vrot.slane %v729, %v736
    %v739 = vunpack.c.l.s4 1966171168
    %v740 = vunpack.c.0.s8 %v739
    %v741 = vlaneseq
    %v742 = vshrl.u32 %v741, 7
    %v743 = vsub.s32 %v740, %v742
    %v744 = vrot.slane %v730, %v743
    %747 = vst [vmem:[#allocation9 + $0x3] sm:$0x1] %v737
    %748 = vst [vmem:[#allocation9 + $0xb] sm:$0x1] %v744
    %v749 = vld [vmem:[#allocation6] sm:$0x44]
    %v750 = vld [vmem:[#allocation6 + $0x8] sm:$0x44]
    %v751 = vunpack.c.l.bf16 %v749
    %v752 = vunpack.c.h.bf16 %v749
    %v753 = vunpack.c.l.bf16 %v750
    %v754 = vunpack.c.h.bf16 %v750
    %v759 = vrot.slane %v751, 2
    %v760 = vrot.slane %v753, 1
    %v761 = vsel %vm279, %v760, %v759
    %v762 = vrot.slane %v752, 2
    %v763 = vrot.slane %v754, 1
    %v764 = vsel %vm279, %v763, %v762
    %v767 = vadd.f32 %v685, %v761
    %v768 = vadd.f32 %v687, %v764
    %v769 = vxor.u32 %v767, 2147483648
    %v770 = vmul.f32 %v769, 1.442695
    %v771 = vpow.pop %v770
    %v772 = vadd.f32 %v771, 1.0
    %v773 = vrcp.pop %v772
    %v774 = vmul.f32 1.0, %v773
    %v775 = vtanh.pop %v768
    %v776 = vsub.f32 %v775, %v648
    %v777 = vmul.f32 %v774, %v776
    %v778 = vadd.f32 %v648, %v777
    %779 = vst [vmem:[#allocation2] sm:$0xc] %v778
    %v782 = vunpack.c.l.s4 1966171168
    %v783 = vunpack.c.0.s8 %v782
    %v784 = vlaneseq
    %v785 = vshrl.u32 %v784, 7
    %v786 = vsub.s32 %v783, %v785
    %v787 = vrot.slane %v778, %v786
    %v788 = vcombine.high %v787, %v787
    %v790 = vunpack.c.l.s4 1966171168
    %v791 = vunpack.c.0.s8 %v790
    %v792 = vlaneseq
    %v793 = vshrl.u32 %v792, 7
    %v794 = vsub.s32 %v791, %v793
    %v795 = vrot.slane %v787, %v794
    %v797 = vunpack.c.l.s4 1966171168
    %v798 = vunpack.c.0.s8 %v797
    %v799 = vlaneseq
    %v800 = vshrl.u32 %v799, 7
    %v801 = vsub.s32 %v798, %v800
    %v802 = vrot.slane %v788, %v801
    %v803 = vcombine.high %v795, %v795
    %v804 = vcombine.high %v802, %v802
    %807 = vst [vmem:[#allocation10 + $0x4] sm:$0x1] %v803
    %808 = vst [vmem:[#allocation10 + $0xc] sm:$0x1] %v804
    %v809 = vld [vmem:[#allocation2] sm:$0xf]
    %v810 = vpack.c.bf16 %v809, %v809
    %811 = vmatprep.subr.bf16.mxu0 %v152
    %812 = vmatpush1.bf16.msra.mxu0 %v151
    %813 = vmatprep.subr.bf16.mxu0 %v150
    %814 = vmatpush1.bf16.msra.mxu0 %v149
    %815 = vmatprep.subr.bf16.mxu0 %v148
    %816 = vmatpush1.bf16.msra.mxu0 %v147
    %817 = vmatprep.subr.bf16.mxu0 %v146
    %818 = vmatpush1.bf16.msra.mxu0 %v145
    %819 = vmatprep.subr.bf16.mxu0 %v144
    %820 = vmatpush1.bf16.msra.mxu0 %v143
    %821 = vmatprep.subr.bf16.mxu0 %v142
    %822 = vmatpush1.bf16.msra.mxu0 %v141
    %823 = vmatprep.subr.bf16.mxu0 %v140
    %824 = vmatpush1.bf16.msra.mxu0 %v139
    %825 = vmatprep.subr.bf16.mxu0 %v138
    %826 = vmatpush1.bf16.msra.mxu0 %v137
    %827 = vmatprep.subr.bf16.mxu0 0
    %828 = vmatpush2.bf16.msra.mxu0 0
    %829 = vmatprep.subr.bf16.mxu0 0
    %830 = vmatpush2.bf16.msra.mxu0 0
    %831 = vmatprep.subr.bf16.mxu0 0
    %832 = vmatpush2.bf16.msra.mxu0 0
    %833 = vmatprep.subr.bf16.mxu0 0
    %834 = vmatpush2.bf16.msra.mxu0 0
    %835 = vmatprep.subr.bf16.mxu0 0
    %836 = vmatpush2.bf16.msra.mxu0 0
    %837 = vmatprep.subr.bf16.mxu0 0
    %838 = vmatpush2.bf16.msra.mxu0 0
    %839 = vmatprep.subr.bf16.mxu0 0
    %840 = vmatpush2.bf16.msra.mxu0 0
    %841 = vmatprep.subr.bf16.mxu0 0
    %842 = vmatpush2.bf16.msra.mxu0 0
    %843 = vmatprep.mubr.bf16.mxu0 0
    %844 = vmatmul.mubr.bf16.gmra.mxu0 %v810
    %v845 = vpop.f32.mrf.mxu0
    %v846 = vadd.f32 0.0, %v845
    %v847 = vpop.f32.mrf.mxu0
    %v848 = vadd.f32 0.0, %v847
    %v849 = vpop.f32.mrf.mxu0
    %v850 = vpop.f32.mrf.mxu0
    %851 = vdwg.mxu0
    %v852 = vld [vmem:[#allocation3] sm:$0x44]
    %v853 = vld [vmem:[#allocation3 + $0x8] sm:$0x44]
    %v854 = vunpack.c.l.bf16 %v852
    %v855 = vunpack.c.h.bf16 %v852
    %v856 = vunpack.c.l.bf16 %v853
    %v857 = vunpack.c.h.bf16 %v853
    %v862 = vrot.slane %v854, 4
    %v863 = vrot.slane %v856, 3
    %v864 = vsel %vm221, %v863, %v862
    %v865 = vrot.slane %v855, 4
    %v866 = vrot.slane %v857, 3
    %v867 = vsel %vm221, %v866, %v865
    %v870 = vadd.f32 %v846, %v864
    %v871 = vadd.f32 %v848, %v867
    %v872 = vxor.u32 %v870, 2147483648
    %v873 = vmul.f32 %v872, 1.442695
    %v874 = vpow.pop %v873
    %v875 = vadd.f32 %v874, 1.0
    %v876 = vrcp.pop %v875
    %v877 = vmul.f32 1.0, %v876
    %v878 = vtanh.pop %v871
    %v879 = vsub.f32 %v878, %v809
    %v880 = vmul.f32 %v877, %v879
    %v881 = vadd.f32 %v809, %v880
    %882 = vst [vmem:[#allocation2] sm:$0x3] %v881
    %v885 = vunpack.c.l.s4 1966171168
    %v886 = vunpack.c.0.s8 %v885
    %v887 = vlaneseq
    %v888 = vshrl.u32 %v887, 7
    %v889 = vsub.s32 %v886, %v888
    %v890 = vrot.slane %v881, %v889
    %v891 = vcombine.high %v890, %v890
    %v893 = vunpack.c.l.s4 1966171168
    %v894 = vunpack.c.0.s8 %v893
    %v895 = vlaneseq
    %v896 = vshrl.u32 %v895, 7
    %v897 = vsub.s32 %v894, %v896
    %v898 = vrot.slane %v890, %v897
    %v900 = vunpack.c.l.s4 1966171168
    %v901 = vunpack.c.0.s8 %v900
    %v902 = vlaneseq
    %v903 = vshrl.u32 %v902, 7
    %v904 = vsub.s32 %v901, %v903
    %v905 = vrot.slane %v891, %v904
    %908 = vst [vmem:[#allocation9 + $0x4] sm:$0x1] %v898
    %909 = vst [vmem:[#allocation9 + $0xc] sm:$0x1] %v905
    %v910 = vld [vmem:[#allocation6] sm:$0x22]
    %v911 = vld [vmem:[#allocation6 + $0x8] sm:$0x22]
    %v912 = vunpack.c.l.bf16 %v910
    %v913 = vunpack.c.h.bf16 %v910
    %v914 = vunpack.c.l.bf16 %v911
    %v915 = vunpack.c.h.bf16 %v911
    %v920 = vrot.slane %v912, 1
    %v921 = vsel %vm279, %v914, %v920
    %v922 = vrot.slane %v913, 1
    %v923 = vsel %vm279, %v915, %v922
    %v926 = vadd.f32 %v846, %v921
    %v927 = vadd.f32 %v848, %v923
    %v928 = vxor.u32 %v926, 2147483648
    %v929 = vmul.f32 %v928, 1.442695
    %v930 = vpow.pop %v929
    %v931 = vadd.f32 %v930, 1.0
    %v932 = vrcp.pop %v931
    %v933 = vmul.f32 1.0, %v932
    %v934 = vtanh.pop %v927
    %v935 = vsub.f32 %v934, %v809
    %v936 = vmul.f32 %v933, %v935
    %v937 = vadd.f32 %v809, %v936
    %938 = vst [vmem:[#allocation2] sm:$0xc] %v937
    %v941 = vunpack.c.l.s4 1966171168
    %v942 = vunpack.c.0.s8 %v941
    %v943 = vlaneseq
    %v944 = vshrl.u32 %v943, 7
    %v945 = vsub.s32 %v942, %v944
    %v946 = vrot.slane %v937, %v945
    %v947 = vcombine.high %v946, %v946
    %v949 = vunpack.c.l.s4 1966171168
    %v950 = vunpack.c.0.s8 %v949
    %v951 = vlaneseq
    %v952 = vshrl.u32 %v951, 7
    %v953 = vsub.s32 %v950, %v952
    %v954 = vrot.slane %v946, %v953
    %v956 = vunpack.c.l.s4 1966171168
    %v957 = vunpack.c.0.s8 %v956
    %v958 = vlaneseq
    %v959 = vshrl.u32 %v958, 7
    %v960 = vsub.s32 %v957, %v959
    %v961 = vrot.slane %v947, %v960
    %v962 = vcombine.high %v954, %v954
    %v963 = vcombine.high %v961, %v961
    %966 = vst [vmem:[#allocation10 + $0x3] sm:$0x1] %v962
    %967 = vst [vmem:[#allocation10 + $0xb] sm:$0x1] %v963
    %v968 = vld [vmem:[#allocation2] sm:$0xf]
    %v969 = vpack.c.bf16 %v968, %v968
    %970 = vmatprep.subr.bf16.mxu0 %v152
    %971 = vmatpush1.bf16.msra.mxu0 %v151
    %972 = vmatprep.subr.bf16.mxu0 %v150
    %973 = vmatpush1.bf16.msra.mxu0 %v149
    %974 = vmatprep.subr.bf16.mxu0 %v148
    %975 = vmatpush1.bf16.msra.mxu0 %v147
    %976 = vmatprep.subr.bf16.mxu0 %v146
    %977 = vmatpush1.bf16.msra.mxu0 %v145
    %978 = vmatprep.subr.bf16.mxu0 %v144
    %979 = vmatpush1.bf16.msra.mxu0 %v143
    %980 = vmatprep.subr.bf16.mxu0 %v142
    %981 = vmatpush1.bf16.msra.mxu0 %v141
    %982 = vmatprep.subr.bf16.mxu0 %v140
    %983 = vmatpush1.bf16.msra.mxu0 %v139
    %984 = vmatprep.subr.bf16.mxu0 %v138
    %985 = vmatpush1.bf16.msra.mxu0 %v137
    %986 = vmatprep.subr.bf16.mxu0 0
    %987 = vmatpush2.bf16.msra.mxu0 0
    %988 = vmatprep.subr.bf16.mxu0 0
    %989 = vmatpush2.bf16.msra.mxu0 0
    %990 = vmatprep.subr.bf16.mxu0 0
    %991 = vmatpush2.bf16.msra.mxu0 0
    %992 = vmatprep.subr.bf16.mxu0 0
    %993 = vmatpush2.bf16.msra.mxu0 0
    %994 = vmatprep.subr.bf16.mxu0 0
    %995 = vmatpush2.bf16.msra.mxu0 0
    %996 = vmatprep.subr.bf16.mxu0 0
    %997 = vmatpush2.bf16.msra.mxu0 0
    %998 = vmatprep.subr.bf16.mxu0 0
    %999 = vmatpush2.bf16.msra.mxu0 0
    %1000 = vmatprep.subr.bf16.mxu0 0
    %1001 = vmatpush2.bf16.msra.mxu0 0
    %1002 = vmatprep.mubr.bf16.mxu0 0
    %1003 = vmatmul.mubr.bf16.gmra.mxu0 %v969
    %v1004 = vpop.f32.mrf.mxu0
    %v1005 = vadd.f32 0.0, %v1004
    %v1006 = vpop.f32.mrf.mxu0
    %v1007 = vadd.f32 0.0, %v1006
    %v1008 = vpop.f32.mrf.mxu0
    %v1009 = vpop.f32.mrf.mxu0
    %1010 = vdwg.mxu0
    %v1011 = vld [vmem:[#allocation3] sm:$0x44]
    %v1012 = vld [vmem:[#allocation3 + $0x8] sm:$0x44]
    %v1013 = vunpack.c.l.bf16 %v1011
    %v1014 = vunpack.c.h.bf16 %v1011
    %v1015 = vunpack.c.l.bf16 %v1012
    %v1016 = vunpack.c.h.bf16 %v1012
    %v1021 = vrot.slane %v1013, 5
    %v1022 = vrot.slane %v1015, 4
    %v1023 = vsel %vm221, %v1022, %v1021
    %v1024 = vrot.slane %v1014, 5
    %v1025 = vrot.slane %v1016, 4
    %v1026 = vsel %vm221, %v1025, %v1024
    %v1029 = vadd.f32 %v1005, %v1023
    %v1030 = vadd.f32 %v1007, %v1026
    %v1031 = vxor.u32 %v1029, 2147483648
    %v1032 = vmul.f32 %v1031, 1.442695
    %v1033 = vpow.pop %v1032
    %v1034 = vadd.f32 %v1033, 1.0
    %v1035 = vrcp.pop %v1034
    %v1036 = vmul.f32 1.0, %v1035
    %v1037 = vtanh.pop %v1030
    %v1038 = vsub.f32 %v1037, %v968
    %v1039 = vmul.f32 %v1036, %v1038
    %v1040 = vadd.f32 %v968, %v1039
    %1041 = vst [vmem:[#allocation2] sm:$0x3] %v1040
    %v1044 = vunpack.c.l.s4 1966171168
    %v1045 = vunpack.c.0.s8 %v1044
    %v1046 = vlaneseq
    %v1047 = vshrl.u32 %v1046, 7
    %v1048 = vsub.s32 %v1045, %v1047
    %v1049 = vrot.slane %v1040, %v1048
    %v1050 = vcombine.high %v1049, %v1049
    %v1052 = vunpack.c.l.s4 1966171168
    %v1053 = vunpack.c.0.s8 %v1052
    %v1054 = vlaneseq
    %v1055 = vshrl.u32 %v1054, 7
    %v1056 = vsub.s32 %v1053, %v1055
    %v1057 = vrot.slane %v1049, %v1056
    %v1059 = vunpack.c.l.s4 1966171168
    %v1060 = vunpack.c.0.s8 %v1059
    %v1061 = vlaneseq
    %v1062 = vshrl.u32 %v1061, 7
    %v1063 = vsub.s32 %v1060, %v1062
    %v1064 = vrot.slane %v1050, %v1063
    %1067 = vst [vmem:[#allocation9 + $0x5] sm:$0x1] %v1057
    %1068 = vst [vmem:[#allocation9 + $0xd] sm:$0x1] %v1064
    %v1069 = vld [vmem:[#allocation6] sm:$0x22]
    %v1070 = vld [vmem:[#allocation6 + $0x8] sm:$0x22]
    %v1071 = vunpack.c.l.bf16 %v1069
    %v1072 = vunpack.c.h.bf16 %v1069
    %v1073 = vunpack.c.l.bf16 %v1070
    %v1074 = vunpack.c.h.bf16 %v1070
    %v1079 = vrot.slane %v1073, 7
    %v1080 = vsel %vm279, %v1079, %v1071
    %v1081 = vrot.slane %v1074, 7
    %v1082 = vsel %vm279, %v1081, %v1072
    %v1085 = vadd.f32 %v1005, %v1080
    %v1086 = vadd.f32 %v1007, %v1082
    %v1087 = vxor.u32 %v1085, 2147483648
    %v1088 = vmul.f32 %v1087, 1.442695
    %v1089 = vpow.pop %v1088
    %v1090 = vadd.f32 %v1089, 1.0
    %v1091 = vrcp.pop %v1090
    %v1092 = vmul.f32 1.0, %v1091
    %v1093 = vtanh.pop %v1086
    %v1094 = vsub.f32 %v1093, %v968
    %v1095 = vmul.f32 %v1092, %v1094
    %v1096 = vadd.f32 %v968, %v1095
    %1097 = vst [vmem:[#allocation2] sm:$0xc] %v1096
    %v1100 = vunpack.c.l.s4 1966171168
    %v1101 = vunpack.c.0.s8 %v1100
    %v1102 = vlaneseq
    %v1103 = vshrl.u32 %v1102, 7
    %v1104 = vsub.s32 %v1101, %v1103
    %v1105 = vrot.slane %v1096, %v1104
    %v1106 = vcombine.high %v1105, %v1105
    %v1108 = vunpack.c.l.s4 1966171168
    %v1109 = vunpack.c.0.s8 %v1108
    %v1110 = vlaneseq
    %v1111 = vshrl.u32 %v1110, 7
    %v1112 = vsub.s32 %v1109, %v1111
    %v1113 = vrot.slane %v1105, %v1112
    %v1115 = vunpack.c.l.s4 1966171168
    %v1116 = vunpack.c.0.s8 %v1115
    %v1117 = vlaneseq
    %v1118 = vshrl.u32 %v1117, 7
    %v1119 = vsub.s32 %v1116, %v1118
    %v1120 = vrot.slane %v1106, %v1119
    %v1121 = vcombine.high %v1113, %v1113
    %v1122 = vcombine.high %v1120, %v1120
    %1125 = vst [vmem:[#allocation10 + $0x2] sm:$0x1] %v1121
    %1126 = vst [vmem:[#allocation10 + $0xa] sm:$0x1] %v1122
    %v1127 = vld [vmem:[#allocation2] sm:$0xf]
    %v1128 = vpack.c.bf16 %v1127, %v1127
    %1129 = vmatprep.subr.bf16.mxu0 %v152
    %1130 = vmatpush1.bf16.msra.mxu0 %v151
    %1131 = vmatprep.subr.bf16.mxu0 %v150
    %1132 = vmatpush1.bf16.msra.mxu0 %v149
    %1133 = vmatprep.subr.bf16.mxu0 %v148
    %1134 = vmatpush1.bf16.msra.mxu0 %v147
    %1135 = vmatprep.subr.bf16.mxu0 %v146
    %1136 = vmatpush1.bf16.msra.mxu0 %v145
    %1137 = vmatprep.subr.bf16.mxu0 %v144
    %1138 = vmatpush1.bf16.msra.mxu0 %v143
    %1139 = vmatprep.subr.bf16.mxu0 %v142
    %1140 = vmatpush1.bf16.msra.mxu0 %v141
    %1141 = vmatprep.subr.bf16.mxu0 %v140
    %1142 = vmatpush1.bf16.msra.mxu0 %v139
    %1143 = vmatprep.subr.bf16.mxu0 %v138
    %1144 = vmatpush1.bf16.msra.mxu0 %v137
    %1145 = vmatprep.subr.bf16.mxu0 0
    %1146 = vmatpush2.bf16.msra.mxu0 0
    %1147 = vmatprep.subr.bf16.mxu0 0
    %1148 = vmatpush2.bf16.msra.mxu0 0
    %1149 = vmatprep.subr.bf16.mxu0 0
    %1150 = vmatpush2.bf16.msra.mxu0 0
    %1151 = vmatprep.subr.bf16.mxu0 0
    %1152 = vmatpush2.bf16.msra.mxu0 0
    %1153 = vmatprep.subr.bf16.mxu0 0
    %1154 = vmatpush2.bf16.msra.mxu0 0
    %1155 = vmatprep.subr.bf16.mxu0 0
    %1156 = vmatpush2.bf16.msra.mxu0 0
    %1157 = vmatprep.subr.bf16.mxu0 0
    %1158 = vmatpush2.bf16.msra.mxu0 0
    %1159 = vmatprep.subr.bf16.mxu0 0
    %1160 = vmatpush2.bf16.msra.mxu0 0
    %1161 = vmatprep.mubr.bf16.mxu0 0
    %1162 = vmatmul.mubr.bf16.gmra.mxu0 %v1128
    %v1163 = vpop.f32.mrf.mxu0
    %v1164 = vadd.f32 0.0, %v1163
    %v1165 = vpop.f32.mrf.mxu0
    %v1166 = vadd.f32 0.0, %v1165
    %v1167 = vpop.f32.mrf.mxu0
    %v1168 = vpop.f32.mrf.mxu0
    %1169 = vdwg.mxu0
    %v1170 = vld [vmem:[#allocation3] sm:$0x88]
    %v1171 = vld [vmem:[#allocation3 + $0x8] sm:$0x88]
    %v1172 = vunpack.c.l.bf16 %v1170
    %v1173 = vunpack.c.h.bf16 %v1170
    %v1174 = vunpack.c.l.bf16 %v1171
    %v1175 = vunpack.c.h.bf16 %v1171
    %v1180 = vrot.slane %v1172, 6
    %v1181 = vrot.slane %v1174, 5
    %v1182 = vsel %vm221, %v1181, %v1180
    %v1183 = vrot.slane %v1173, 6
    %v1184 = vrot.slane %v1175, 5
    %v1185 = vsel %vm221, %v1184, %v1183
    %v1188 = vadd.f32 %v1164, %v1182
    %v1189 = vadd.f32 %v1166, %v1185
    %v1190 = vxor.u32 %v1188, 2147483648
    %v1191 = vmul.f32 %v1190, 1.442695
    %v1192 = vpow.pop %v1191
    %v1193 = vadd.f32 %v1192, 1.0
    %v1194 = vrcp.pop %v1193
    %v1195 = vmul.f32 1.0, %v1194
    %v1196 = vtanh.pop %v1189
    %v1197 = vsub.f32 %v1196, %v1127
    %v1198 = vmul.f32 %v1195, %v1197
    %v1199 = vadd.f32 %v1127, %v1198
    %1200 = vst [vmem:[#allocation2] sm:$0x3] %v1199
    %v1203 = vunpack.c.l.s4 1966171168
    %v1204 = vunpack.c.0.s8 %v1203
    %v1205 = vlaneseq
    %v1206 = vshrl.u32 %v1205, 7
    %v1207 = vsub.s32 %v1204, %v1206
    %v1208 = vrot.slane %v1199, %v1207
    %v1209 = vcombine.high %v1208, %v1208
    %v1211 = vunpack.c.l.s4 1966171168
    %v1212 = vunpack.c.0.s8 %v1211
    %v1213 = vlaneseq
    %v1214 = vshrl.u32 %v1213, 7
    %v1215 = vsub.s32 %v1212, %v1214
    %v1216 = vrot.slane %v1208, %v1215
    %v1218 = vunpack.c.l.s4 1966171168
    %v1219 = vunpack.c.0.s8 %v1218
    %v1220 = vlaneseq
    %v1221 = vshrl.u32 %v1220, 7
    %v1222 = vsub.s32 %v1219, %v1221
    %v1223 = vrot.slane %v1209, %v1222
    %1226 = vst [vmem:[#allocation9 + $0x6] sm:$0x1] %v1216
    %1227 = vst [vmem:[#allocation9 + $0xe] sm:$0x1] %v1223
    %v1228 = vld [vmem:[#allocation6] sm:$0x11]
    %v1229 = vld [vmem:[#allocation6 + $0x8] sm:$0x11]
    %v1230 = vunpack.c.l.bf16 %v1228
    %v1231 = vunpack.c.h.bf16 %v1228
    %v1232 = vunpack.c.l.bf16 %v1229
    %v1233 = vunpack.c.h.bf16 %v1229
    %v1238 = vrot.slane %v1230, 7
    %v1239 = vrot.slane %v1232, 6
    %v1240 = vsel %vm279, %v1239, %v1238
    %v1241 = vrot.slane %v1231, 7
    %v1242 = vrot.slane %v1233, 6
    %v1243 = vsel %vm279, %v1242, %v1241
    %v1246 = vadd.f32 %v1164, %v1240
    %v1247 = vadd.f32 %v1166, %v1243
    %v1248 = vxor.u32 %v1246, 2147483648
    %v1249 = vmul.f32 %v1248, 1.442695
    %v1250 = vpow.pop %v1249
    %v1251 = vadd.f32 %v1250, 1.0
    %v1252 = vrcp.pop %v1251
    %v1253 = vmul.f32 1.0, %v1252
    %v1254 = vtanh.pop %v1247
    %v1255 = vsub.f32 %v1254, %v1127
    %v1256 = vmul.f32 %v1253, %v1255
    %v1257 = vadd.f32 %v1127, %v1256
    %1258 = vst [vmem:[#allocation2] sm:$0xc] %v1257
    %v1261 = vunpack.c.l.s4 1966171168
    %v1262 = vunpack.c.0.s8 %v1261
    %v1263 = vlaneseq
    %v1264 = vshrl.u32 %v1263, 7
    %v1265 = vsub.s32 %v1262, %v1264
    %v1266 = vrot.slane %v1257, %v1265
    %v1267 = vcombine.high %v1266, %v1266
    %v1269 = vunpack.c.l.s4 1966171168
    %v1270 = vunpack.c.0.s8 %v1269
    %v1271 = vlaneseq
    %v1272 = vshrl.u32 %v1271, 7
    %v1273 = vsub.s32 %v1270, %v1272
    %v1274 = vrot.slane %v1266, %v1273
    %v1276 = vunpack.c.l.s4 1966171168
    %v1277 = vunpack.c.0.s8 %v1276
    %v1278 = vlaneseq
    %v1279 = vshrl.u32 %v1278, 7
    %v1280 = vsub.s32 %v1277, %v1279
    %v1281 = vrot.slane %v1267, %v1280
    %v1282 = vcombine.high %v1274, %v1274
    %v1283 = vcombine.high %v1281, %v1281
    %1286 = vst [vmem:[#allocation10 + $0x1] sm:$0x1] %v1282
    %1287 = vst [vmem:[#allocation10 + $0x9] sm:$0x1] %v1283
    %v1288 = vld [vmem:[#allocation2] sm:$0xf]
    %v1289 = vpack.c.bf16 %v1288, %v1288
    %1290 = vmatprep.subr.bf16.mxu0 %v152
    %1291 = vmatpush1.bf16.msra.mxu0 %v151
    %1292 = vmatprep.subr.bf16.mxu0 %v150
    %1293 = vmatpush1.bf16.msra.mxu0 %v149
    %1294 = vmatprep.subr.bf16.mxu0 %v148
    %1295 = vmatpush1.bf16.msra.mxu0 %v147
    %1296 = vmatprep.subr.bf16.mxu0 %v146
    %1297 = vmatpush1.bf16.msra.mxu0 %v145
    %1298 = vmatprep.subr.bf16.mxu0 %v144
    %1299 = vmatpush1.bf16.msra.mxu0 %v143
    %1300 = vmatprep.subr.bf16.mxu0 %v142
    %1301 = vmatpush1.bf16.msra.mxu0 %v141
    %1302 = vmatprep.subr.bf16.mxu0 %v140
    %1303 = vmatpush1.bf16.msra.mxu0 %v139
    %1304 = vmatprep.subr.bf16.mxu0 %v138
    %1305 = vmatpush1.bf16.msra.mxu0 %v137
    %1306 = vmatprep.subr.bf16.mxu0 0
    %1307 = vmatpush2.bf16.msra.mxu0 0
    %1308 = vmatprep.subr.bf16.mxu0 0
    %1309 = vmatpush2.bf16.msra.mxu0 0
    %1310 = vmatprep.subr.bf16.mxu0 0
    %1311 = vmatpush2.bf16.msra.mxu0 0
    %1312 = vmatprep.subr.bf16.mxu0 0
    %1313 = vmatpush2.bf16.msra.mxu0 0
    %1314 = vmatprep.subr.bf16.mxu0 0
    %1315 = vmatpush2.bf16.msra.mxu0 0
    %1316 = vmatprep.subr.bf16.mxu0 0
    %1317 = vmatpush2.bf16.msra.mxu0 0
    %1318 = vmatprep.subr.bf16.mxu0 0
    %1319 = vmatpush2.bf16.msra.mxu0 0
    %1320 = vmatprep.subr.bf16.mxu0 0
    %1321 = vmatpush2.bf16.msra.mxu0 0
    %1322 = vmatprep.mubr.bf16.mxu0 0
    %1323 = vmatmul.mubr.bf16.gmra.mxu0 %v1289
    %v1324 = vpop.f32.mrf.mxu0
    %v1325 = vadd.f32 0.0, %v1324
    %v1326 = vpop.f32.mrf.mxu0
    %v1327 = vadd.f32 0.0, %v1326
    %v1328 = vpop.f32.mrf.mxu0
    %v1329 = vpop.f32.mrf.mxu0
    %1330 = vdwg.mxu0
    %v1331 = vld [vmem:[#allocation3] sm:$0x88]
    %v1332 = vld [vmem:[#allocation3 + $0x8] sm:$0x88]
    %v1333 = vunpack.c.l.bf16 %v1331
    %v1334 = vunpack.c.h.bf16 %v1331
    %v1335 = vunpack.c.l.bf16 %v1332
    %v1336 = vunpack.c.h.bf16 %v1332
    %v1341 = vrot.slane %v1333, 7
    %v1342 = vrot.slane %v1335, 6
    %v1343 = vsel %vm221, %v1342, %v1341
    %v1344 = vrot.slane %v1334, 7
    %v1345 = vrot.slane %v1336, 6
    %v1346 = vsel %vm221, %v1345, %v1344
    %v1349 = vadd.f32 %v1325, %v1343
    %v1350 = vadd.f32 %v1327, %v1346
    %v1351 = vxor.u32 %v1349, 2147483648
    %v1352 = vmul.f32 %v1351, 1.442695
    %v1353 = vpow.pop %v1352
    %v1354 = vadd.f32 %v1353, 1.0
    %v1355 = vrcp.pop %v1354
    %v1356 = vmul.f32 1.0, %v1355
    %v1357 = vtanh.pop %v1350
    %v1358 = vsub.f32 %v1357, %v1288
    %v1359 = vmul.f32 %v1356, %v1358
    %v1360 = vadd.f32 %v1288, %v1359
    %1361 = vst [vmem:[#allocation2] sm:$0x3] %v1360
    %v1364 = vunpack.c.l.s4 1966171168
    %v1365 = vunpack.c.0.s8 %v1364
    %v1366 = vlaneseq
    %v1367 = vshrl.u32 %v1366, 7
    %v1368 = vsub.s32 %v1365, %v1367
    %v1369 = vrot.slane %v1360, %v1368
    %v1370 = vcombine.high %v1369, %v1369
    %v1372 = vunpack.c.l.s4 1966171168
    %v1373 = vunpack.c.0.s8 %v1372
    %v1374 = vlaneseq
    %v1375 = vshrl.u32 %v1374, 7
    %v1376 = vsub.s32 %v1373, %v1375
    %v1377 = vrot.slane %v1369, %v1376
    %v1379 = vunpack.c.l.s4 1966171168
    %v1380 = vunpack.c.0.s8 %v1379
    %v1381 = vlaneseq
    %v1382 = vshrl.u32 %v1381, 7
    %v1383 = vsub.s32 %v1380, %v1382
    %v1384 = vrot.slane %v1370, %v1383
    %1387 = vst [vmem:[#allocation9 + $0x7] sm:$0x1] %v1377
    %1388 = vst [vmem:[#allocation9 + $0xf] sm:$0x1] %v1384
    %v1389 = vld [vmem:[#allocation6] sm:$0x11]
    %v1390 = vld [vmem:[#allocation6 + $0x8] sm:$0x11]
    %v1391 = vunpack.c.l.bf16 %v1389
    %v1392 = vunpack.c.h.bf16 %v1389
    %v1393 = vunpack.c.l.bf16 %v1390
    %v1394 = vunpack.c.h.bf16 %v1390
    %v1399 = vrot.slane %v1391, 6
    %v1400 = vrot.slane %v1393, 5
    %v1401 = vsel %vm279, %v1400, %v1399
    %v1402 = vrot.slane %v1392, 6
    %v1403 = vrot.slane %v1394, 5
    %v1404 = vsel %vm279, %v1403, %v1402
    %v1407 = vadd.f32 %v1325, %v1401
    %v1408 = vadd.f32 %v1327, %v1404
    %v1409 = vxor.u32 %v1407, 2147483648
    %v1410 = vmul.f32 %v1409, 1.442695
    %v1411 = vpow.pop %v1410
    %v1412 = vadd.f32 %v1411, 1.0
    %v1413 = vrcp.pop %v1412
    %v1414 = vmul.f32 1.0, %v1413
    %v1415 = vtanh.pop %v1408
    %v1416 = vsub.f32 %v1415, %v1288
    %v1417 = vmul.f32 %v1414, %v1416
    %v1418 = vadd.f32 %v1288, %v1417
    %1419 = vst [vmem:[#allocation2] sm:$0xc] %v1418
    %v1422 = vunpack.c.l.s4 1966171168
    %v1423 = vunpack.c.0.s8 %v1422
    %v1424 = vlaneseq
    %v1425 = vshrl.u32 %v1424, 7
    %v1426 = vsub.s32 %v1423, %v1425
    %v1427 = vrot.slane %v1418, %v1426
    %v1428 = vcombine.high %v1427, %v1427
    %v1430 = vunpack.c.l.s4 1966171168
    %v1431 = vunpack.c.0.s8 %v1430
    %v1432 = vlaneseq
    %v1433 = vshrl.u32 %v1432, 7
    %v1434 = vsub.s32 %v1431, %v1433
    %v1435 = vrot.slane %v1427, %v1434
    %v1437 = vunpack.c.l.s4 1966171168
    %v1438 = vunpack.c.0.s8 %v1437
    %v1439 = vlaneseq
    %v1440 = vshrl.u32 %v1439, 7
    %v1441 = vsub.s32 %v1438, %v1440
    %v1442 = vrot.slane %v1428, %v1441
    %v1443 = vcombine.high %v1435, %v1435
    %v1444 = vcombine.high %v1442, %v1442
    %1447 = vst [vmem:[#allocation10] sm:$0x1] %v1443
    %1448 = vst [vmem:[#allocation10 + $0x8] sm:$0x1] %v1444
    // Predicated region
    $region30: #{tpu_custom_call.1} parent=1 // pred_check
      _
    $region31: #{tpu_custom_call.1} parent=1 // pred_check_branch
      %1450 = sbr.rel (0) target = $region33
    $region32: #{tpu_custom_call.1} parent=1 // pred_region
      %s1452 = ssub.s32 256, 256
      %1453 = vsyncadd [#allocation5], %s1452
      %s1454 = sshll.u32 [#allocation9], 4
      %s1455 = int_to_ptr.vmem [resolvable:$true] %s1454
      %1460 = dma.vmem_to_hbm [thread:$0]  %s1455, 256, %s3, [#allocation5], 128, 128, 8
    $region33: #{tpu_custom_call.1} parent=1 // pred_fallthru
      _
    // Predicated region
    $region34: #{tpu_custom_call.1} parent=1 // pred_check
      _
    $region35: #{tpu_custom_call.1} parent=1 // pred_check_branch
      %1462 = sbr.rel (0) target = $region37
    $region36: #{tpu_custom_call.1} parent=1 // pred_region
      %s1463 = ssub.s32 0, 0
      %s1465 = ssub.s32 256, 256
      %1466 = vsyncadd [#allocation11], %s1465
      %s1467 = smul.addr %s1463, 128
      %s1468 = scalar_lea.hbm %s4, %s1467
      %s1469 = sshll.u32 [#allocation10], 4
      %s1470 = int_to_ptr.vmem [resolvable:$true] %s1469
      %1475 = dma.vmem_to_hbm [thread:$0]  %s1470, 256, %s1468, [#allocation11], 128, 128, 8
    $region37: #{tpu_custom_call.1} parent=1 // pred_fallthru
      _
    // Predicated region
    $region38: #{tpu_custom_call.1} parent=1 // pred_check
      _
    $region39: #{tpu_custom_call.1} parent=1 // pred_check_branch
      %1477 = sbr.rel (0) target = $region41
    $region40: #{tpu_custom_call.1} parent=1 // pred_region
      %1478 = dma.done [#allocation5], 256
    $region41: #{tpu_custom_call.1} parent=1 // pred_fallthru
      _
    // Predicated region
    $region42: #{tpu_custom_call.1} parent=1 // pred_check
      _
    $region43: #{tpu_custom_call.1} parent=1 // pred_check_branch
      %1480 = sbr.rel (0) target = $region45
    $region44: #{tpu_custom_call.1} parent=1 // pred_region
      %1481 = dma.done [#allocation11], 256
    $region45: #{tpu_custom_call.1} parent=1 // pred_fallthru
      _
    %1482 = vsyncpa [#allocation4], 1
    %1483 = vsyncpa [#allocation7], 1
    %1484 = vsyncpa [#allocation5], 1
    %1485 = vsyncpa [#allocation11], 1

</llo_original>
